<compile_context>
chip_gen: v7x
topology: tpu7x:2x2x1
jax: 0.10.0
libtpu: 0.0.40
codegen_flags: <defaults>
</compile_context>

<pallas_src>
import functools
import math

import jax
import jax.numpy as jnp
import numpy as np
from jax.experimental import pallas as pl
from jax.experimental.pallas import tpu as pltpu  # noqa: F401  (not needed at this size)

EPS = 1e-5


def _decoder_kernel(x_ref, wqkv_ref, wf_ref, consts_ref, o_ref, *,
                    num_heads, head_dim):
    H, hd = num_heads, head_dim
    B, S, D = x_ref.shape
    n_inv = 1.0 / float(S * D)

    # Hoisted loads: weights / constants read once, reused across both batches.
    wqkv = wqkv_ref[...]                 # (D, 2*D + H*D) bf16, scale folded into Q cols
    wf = wf_ref[...]                     # (D, D) bf16
    ga, ba = consts_ref[0], consts_ref[1]     # attn_norm gamma / beta   (S, D)
    gf, bff = consts_ref[2], consts_ref[3]    # ffn_norm  gamma / beta   (S, D)
    bias = consts_ref[4]                      # FFN bias broadcast to    (S, D)

    # 2-D causal mask, broadcast-free (row = query index, col = key index).
    row = jax.lax.broadcasted_iota(jnp.int32, (S, S), 0)
    col = jax.lax.broadcasted_iota(jnp.int32, (S, S), 1)
    causal = row >= col

    def ln2d(y, g, b):
        # LayerNorm over the whole (S, D) slab (PyTorch LayerNorm([seq_len, input_dim])),
        # single-pass sum / sum-of-squares, var clamped at 0.
        sy = jnp.sum(y, axis=-1, keepdims=True)                  # (S, 1)
        syy = jnp.sum(y * y, axis=-1, keepdims=True)             # (S, 1)
        mu = jnp.sum(sy, axis=0, keepdims=True) * n_inv          # (1, 1)
        ms = jnp.sum(syy, axis=0, keepdims=True) * n_inv         # (1, 1)
        var = jnp.maximum(ms - mu * mu, 0.0)
        return (y - mu) * jax.lax.rsqrt(var + EPS) * g + b

    for b in range(B):                                           # static; one grid step total
        x_b = x_ref[b]                                           # (S, D) f32

        # ---- fused Q | K | head-merged-V projection: one bf16 MXU matmul ----
        qkv = jnp.dot(x_b.astype(jnp.bfloat16), wqkv,
                      preferred_element_type=jnp.float32)        # (S, 2*D + H*D) f32

        # ---- causal attention; PV output is already in the merged 's (h e)' layout ----
        attn = None
        for h in range(H):                                       # static, H tiny
            q = qkv[:, h * hd:(h + 1) * hd]                      # (S, hd)  (scale pre-folded)
            k = qkv[:, D + h * hd:D + (h + 1) * hd]              # (S, hd)
            vp = qkv[:, 2 * D + h * D:2 * D + (h + 1) * D]       # (S, D)   (head-placed V)
            s = jnp.einsum('qe,ke->qk', q, k,
                           preferred_element_type=jnp.float32)   # (S, S)
            s = jnp.where(causal, s, -1000000.0)                 # masked_fill(mask == 0, -1e6)
            s = s - jnp.max(s, axis=-1, keepdims=True)
            p = jnp.exp(s)
            p = p * pl.reciprocal(jnp.sum(p, axis=-1, keepdims=True), approx=True)
            o_h = jnp.dot(p, vp, preferred_element_type=jnp.float32)   # (S, D)
            attn = o_h if attn is None else attn + o_h

        # ---- add & norm ----
        h1 = ln2d(attn + x_b, ga, ba)

        # ---- FFN (Linear with bias, bf16 MXU operands) + add & norm ----
        f = jnp.dot(h1.astype(jnp.bfloat16), wf,
                    preferred_element_type=jnp.float32) + bias
        out = ln2d(f + h1, gf, bff)

        o_ref[b] = out.astype(o_ref.dtype)


def transformer_decoder(x, wq, wk, wv, wf, bf, g_attn, b_attn, g_ffn, b_ffn,
                        *, num_heads):
    B, S, D = x.shape
    H = num_heads
    hd = D // H
    scale = 1.0 / math.sqrt(float(hd))

    # --- host-side packing (one-time) ---
    # Q with the softmax scale folded in; K unchanged.
    wq_s = (wq * scale).astype(jnp.float32)

    # V with the head-merge folded in: head h's V columns are pre-placed at output
    # lanes [h*hd, (h+1)*hd) of a (D, D) block; PV then directly yields the merged
    # 'b h s he -> b s (h he)' layout when summed over heads.
    wv_np = np.asarray(wv, dtype=np.float32)
    v_blocks = []
    for h in range(H):
        blk = np.zeros((D, D), np.float32)
        blk[:, h * hd:(h + 1) * hd] = wv_np[:, h * hd:(h + 1) * hd]
        v_blocks.append(blk)
    wv_fold = jnp.asarray(np.concatenate(v_blocks, axis=1))      # (D, H*D)

    wqkv = jnp.concatenate([wq_s, wk, wv_fold],
                           axis=1).astype(jnp.bfloat16)          # (D, 2*D + H*D)
    wf_b = wf.astype(jnp.bfloat16)

    # One packed constant: [attn gamma, attn beta, ffn gamma, ffn beta, ffn bias].
    consts = jnp.stack([g_attn, b_attn, g_ffn, b_ffn,
                        jnp.broadcast_to(bf, (S, D))], axis=0).astype(jnp.float32)

    kernel = functools.partial(_decoder_kernel, num_heads=H, head_dim=hd)

    # No grid: a single kernel invocation, whole arrays resident in VMEM (<100 KiB).
    return pl.pallas_call(
        kernel,
        out_shape=jax.ShapeDtypeStruct((B, S, D), x.dtype),
    )(x, wqkv, wf_b, consts)


def reference_decoder(x, wq, wk, wv, wf, bf, g_attn, b_attn, g_ffn, b_ffn,
                      *, num_heads):
    """Pure-JAX f32 reference mirroring the PyTorch forward."""
    B, S, D = x.shape
    hd = D // num_heads

    def ln2d(y, g, b):
        mu = jnp.mean(y, axis=(1, 2), keepdims=True)
        var = jnp.mean((y - mu) ** 2, axis=(1, 2), keepdims=True)
        return (y - mu) / jnp.sqrt(var + EPS) * g + b

    q = (x @ wq).reshape(B, S, num_heads, hd).transpose(0, 2, 1, 3)
    k = (x @ wk).reshape(B, S, num_heads, hd).transpose(0, 2, 1, 3)
    v = (x @ wv).reshape(B, S, num_heads, hd).transpose(0, 2, 1, 3)
    mask = jnp.tril(jnp.ones((S, S)))
    s = jnp.einsum('bhqd,bhkd->bhqk', q, k) / math.sqrt(float(hd))
    s = jnp.where(mask == 0, -1000000.0, s)
    p = jax.nn.softmax(s, axis=-1)
    attn = jnp.einsum('bhqk,bhkd->bhqd', p, v).transpose(0, 2, 1, 3).reshape(B, S, D)

    h1 = ln2d(attn + x, g_attn, b_attn)
    f = h1 @ wf + bf[0]
    return ln2d(f + h1, g_ffn, b_ffn)


if __name__ == "__main__":
    B, S, D, H = 2, 8, 32, 4          # batch, seq_len, input_dim, num_heads

    key = jax.random.PRNGKey(0)
    kx, kq, kk, kv, kf, kb = jax.random.split(key, 6)

    x = jax.random.normal(kx, (B, S, D), dtype=jnp.float32)
    # Linear weights stored as (D_in, D_out) = PyTorch W.T; deterministic small-scale init.
    wq = jax.random.normal(kq, (D, D), dtype=jnp.float32) * 0.08
    wk = jax.random.normal(kk, (D, D), dtype=jnp.float32) * 0.08
    wv = jax.random.normal(kv, (D, D), dtype=jnp.float32) * 0.08
    wf = jax.random.normal(kf, (D, D), dtype=jnp.float32) * 0.08
    bf = (jax.random.normal(kb, (1, D), dtype=jnp.float32) * 0.05)
    # LayerNorm affine params (PyTorch default init: gamma=1, beta=0).
    g_attn = jnp.ones((S, D), jnp.float32)
    b_attn = jnp.zeros((S, D), jnp.float32)
    g_ffn = jnp.ones((S, D), jnp.float32)
    b_ffn = jnp.zeros((S, D), jnp.float32)

    out = transformer_decoder(x, wq, wk, wv, wf, bf,
                              g_attn, b_attn, g_ffn, b_ffn, num_heads=H)
    out = jax.block_until_ready(out)

    ref = reference_decoder(x, wq, wk, wv, wf, bf,
                            g_attn, b_attn, g_ffn, b_ffn, num_heads=H)
    ref = jax.block_until_ready(ref)

    np.testing.assert_allclose(np.asarray(out), np.asarray(ref),
                               rtol=2e-2, atol=2e-2)
    print("KERNEL_OK")
</pallas_src>

<mosaic_0001>
module attributes {stable_mosaic.version = 11 : i64} {
  func.func @_decoder_kernel(%arg0: memref<2x8x32xf32, #tpu.memory_space<vmem>>, %arg1: memref<32x192xbf16, #tpu.memory_space<vmem>>, %arg2: memref<32x32xbf16, #tpu.memory_space<vmem>>, %arg3: memref<5x8x32xf32, #tpu.memory_space<vmem>>, %arg4: memref<2x8x32xf32, #tpu.memory_space<vmem>>) attributes {dimension_semantics = [], scalar_prefetch = 0 : i64, scratch_operands = 0 : i64, tpu.core_type = #tpu.core_type<tc>} {
    %c0 = arith.constant 0 : index
    %c0_0 = arith.constant 0 : index
    %0 = vector.load %arg1[%c0, %c0_0] : memref<32x192xbf16, #tpu.memory_space<vmem>>, vector<32x192xbf16>
    %c0_1 = arith.constant 0 : index
    %c0_2 = arith.constant 0 : index
    %1 = vector.load %arg2[%c0_1, %c0_2] : memref<32x32xbf16, #tpu.memory_space<vmem>>, vector<32x32xbf16>
    %c0_3 = arith.constant 0 : index
    %c0_4 = arith.constant 0 : index
    %c0_5 = arith.constant 0 : index
    %2 = vector.load %arg3[%c0_3, %c0_4, %c0_5] : memref<5x8x32xf32, #tpu.memory_space<vmem>>, vector<1x8x32xf32>
    %3 = vector.shape_cast %2 : vector<1x8x32xf32> to vector<8x32xf32>
    %c1 = arith.constant 1 : index
    %c0_6 = arith.constant 0 : index
    %c0_7 = arith.constant 0 : index
    %4 = vector.load %arg3[%c1, %c0_6, %c0_7] : memref<5x8x32xf32, #tpu.memory_space<vmem>>, vector<1x8x32xf32>
    %5 = vector.shape_cast %4 : vector<1x8x32xf32> to vector<8x32xf32>
    %c2 = arith.constant 2 : index
    %c0_8 = arith.constant 0 : index
    %c0_9 = arith.constant 0 : index
    %6 = vector.load %arg3[%c2, %c0_8, %c0_9] : memref<5x8x32xf32, #tpu.memory_space<vmem>>, vector<1x8x32xf32>
    %7 = vector.shape_cast %6 : vector<1x8x32xf32> to vector<8x32xf32>
    %c3 = arith.constant 3 : index
    %c0_10 = arith.constant 0 : index
    %c0_11 = arith.constant 0 : index
    %8 = vector.load %arg3[%c3, %c0_10, %c0_11] : memref<5x8x32xf32, #tpu.memory_space<vmem>>, vector<1x8x32xf32>
    %9 = vector.shape_cast %8 : vector<1x8x32xf32> to vector<8x32xf32>
    %c4 = arith.constant 4 : index
    %c0_12 = arith.constant 0 : index
    %c0_13 = arith.constant 0 : index
    %10 = vector.load %arg3[%c4, %c0_12, %c0_13] : memref<5x8x32xf32, #tpu.memory_space<vmem>>, vector<1x8x32xf32>
    %11 = vector.shape_cast %10 : vector<1x8x32xf32> to vector<8x32xf32>
    %12 = tpu.iota {dimensions = array<i32: 0>} : vector<8x8xi32>
    %13 = tpu.iota {dimensions = array<i32: 1>} : vector<8x8xi32>
    %14 = arith.cmpi sge, %12, %13 : vector<8x8xi32>
    %c0_14 = arith.constant 0 : index
    %c0_15 = arith.constant 0 : index
    %c0_16 = arith.constant 0 : index
    %15 = vector.load %arg0[%c0_14, %c0_15, %c0_16] : memref<2x8x32xf32, #tpu.memory_space<vmem>>, vector<1x8x32xf32>
    %16 = vector.shape_cast %15 : vector<1x8x32xf32> to vector<8x32xf32>
    %17 = arith.truncf %16 : vector<8x32xf32> to vector<8x32xbf16>
    %cst = arith.constant dense<0.000000e+00> : vector<8x192xf32>
    %18 = tpu.matmul %17, %0, %cst {dimension_numbers = #tpu.dot_dimension_numbers<[1], [0], [0], [1], [0, 0, 1, 1], [], []>} : vector<8x32xbf16>, vector<32x192xbf16>, vector<8x192xf32> -> vector<8x192xf32>
    %19 = vector.extract_strided_slice %18 {offsets = [0, 0], sizes = [8, 8], strides = [1, 1]} : vector<8x192xf32> to vector<8x8xf32>
    %20 = vector.extract_strided_slice %18 {offsets = [0, 32], sizes = [8, 8], strides = [1, 1]} : vector<8x192xf32> to vector<8x8xf32>
    %21 = vector.extract_strided_slice %18 {offsets = [0, 64], sizes = [8, 32], strides = [1, 1]} : vector<8x192xf32> to vector<8x32xf32>
    "tpu.trace_start"() <{level = 10 : i32, message = "qe,ke->qk"}> : () -> ()
    %cst_17 = arith.constant dense<0.000000e+00> : vector<8x8xf32>
    %22 = tpu.matmul %19, %20, %cst_17 {dimension_numbers = #tpu.dot_dimension_numbers<[1], [1], [0], [0], [0, 0, 1, 0], [], []>} : vector<8x8xf32>, vector<8x8xf32>, vector<8x8xf32> -> vector<8x8xf32>
    %cst_18 = arith.constant -1.000000e+06 : f32
    "tpu.trace_stop"() : () -> ()
    %23 = vector.broadcast %cst_18 : f32 to vector<8x8xf32>
    %24 = arith.select %14, %22, %23 : vector<8x8xi1>, vector<8x8xf32>
    %cst_19 = arith.constant dense<0xFF800000> : vector<8xf32>
    %25 = vector.multi_reduction <maximumf>, %24, %cst_19 [1] : vector<8x8xf32> to vector<8xf32>
    %26 = vector.shape_cast %25 : vector<8xf32> to vector<8x1xf32>
    %27 = vector.broadcast %26 : vector<8x1xf32> to vector<8x8xf32>
    %28 = arith.subf %24, %27 : vector<8x8xf32>
    %29 = math.exp %28 : vector<8x8xf32>
    %cst_20 = arith.constant dense<0.000000e+00> : vector<8xf32>
    %30 = vector.multi_reduction <add>, %29, %cst_20 [1] : vector<8x8xf32> to vector<8xf32>
    %31 = vector.shape_cast %30 : vector<8xf32> to vector<8x1xf32>
    %32 = tpu.reciprocal %31 {approx = true} : vector<8x1xf32> -> vector<8x1xf32>
    %33 = vector.broadcast %32 : vector<8x1xf32> to vector<8x8xf32>
    %34 = arith.mulf %29, %33 : vector<8x8xf32>
    %cst_21 = arith.constant dense<0.000000e+00> : vector<8x32xf32>
    %35 = tpu.matmul %34, %21, %cst_21 {dimension_numbers = #tpu.dot_dimension_numbers<[1], [0], [0], [1], [0, 0, 1, 1], [], []>} : vector<8x8xf32>, vector<8x32xf32>, vector<8x32xf32> -> vector<8x32xf32>
    %36 = vector.extract_strided_slice %18 {offsets = [0, 8], sizes = [8, 8], strides = [1, 1]} : vector<8x192xf32> to vector<8x8xf32>
    %37 = vector.extract_strided_slice %18 {offsets = [0, 40], sizes = [8, 8], strides = [1, 1]} : vector<8x192xf32> to vector<8x8xf32>
    %38 = vector.extract_strided_slice %18 {offsets = [0, 96], sizes = [8, 32], strides = [1, 1]} : vector<8x192xf32> to vector<8x32xf32>
    "tpu.trace_start"() <{level = 10 : i32, message = "qe,ke->qk"}> : () -> ()
    %cst_22 = arith.constant dense<0.000000e+00> : vector<8x8xf32>
    %39 = tpu.matmul %36, %37, %cst_22 {dimension_numbers = #tpu.dot_dimension_numbers<[1], [1], [0], [0], [0, 0, 1, 0], [], []>} : vector<8x8xf32>, vector<8x8xf32>, vector<8x8xf32> -> vector<8x8xf32>
    %cst_23 = arith.constant -1.000000e+06 : f32
    "tpu.trace_stop"() : () -> ()
    %40 = vector.broadcast %cst_23 : f32 to vector<8x8xf32>
    %41 = arith.select %14, %39, %40 : vector<8x8xi1>, vector<8x8xf32>
    %cst_24 = arith.constant dense<0xFF800000> : vector<8xf32>
    %42 = vector.multi_reduction <maximumf>, %41, %cst_24 [1] : vector<8x8xf32> to vector<8xf32>
    %43 = vector.shape_cast %42 : vector<8xf32> to vector<8x1xf32>
    %44 = vector.broadcast %43 : vector<8x1xf32> to vector<8x8xf32>
    %45 = arith.subf %41, %44 : vector<8x8xf32>
    %46 = math.exp %45 : vector<8x8xf32>
    %cst_25 = arith.constant dense<0.000000e+00> : vector<8xf32>
    %47 = vector.multi_reduction <add>, %46, %cst_25 [1] : vector<8x8xf32> to vector<8xf32>
    %48 = vector.shape_cast %47 : vector<8xf32> to vector<8x1xf32>
    %49 = tpu.reciprocal %48 {approx = true} : vector<8x1xf32> -> vector<8x1xf32>
    %50 = vector.broadcast %49 : vector<8x1xf32> to vector<8x8xf32>
    %51 = arith.mulf %46, %50 : vector<8x8xf32>
    %cst_26 = arith.constant dense<0.000000e+00> : vector<8x32xf32>
    %52 = tpu.matmul %51, %38, %cst_26 {dimension_numbers = #tpu.dot_dimension_numbers<[1], [0], [0], [1], [0, 0, 1, 1], [], []>} : vector<8x8xf32>, vector<8x32xf32>, vector<8x32xf32> -> vector<8x32xf32>
    %53 = arith.addf %35, %52 : vector<8x32xf32>
    %54 = vector.extract_strided_slice %18 {offsets = [0, 16], sizes = [8, 8], strides = [1, 1]} : vector<8x192xf32> to vector<8x8xf32>
    %55 = vector.extract_strided_slice %18 {offsets = [0, 48], sizes = [8, 8], strides = [1, 1]} : vector<8x192xf32> to vector<8x8xf32>
    %56 = vector.extract_strided_slice %18 {offsets = [0, 128], sizes = [8, 32], strides = [1, 1]} : vector<8x192xf32> to vector<8x32xf32>
    "tpu.trace_start"() <{level = 10 : i32, message = "qe,ke->qk"}> : () -> ()
    %cst_27 = arith.constant dense<0.000000e+00> : vector<8x8xf32>
    %57 = tpu.matmul %54, %55, %cst_27 {dimension_numbers = #tpu.dot_dimension_numbers<[1], [1], [0], [0], [0, 0, 1, 0], [], []>} : vector<8x8xf32>, vector<8x8xf32>, vector<8x8xf32> -> vector<8x8xf32>
    %cst_28 = arith.constant -1.000000e+06 : f32
    "tpu.trace_stop"() : () -> ()
    %58 = vector.broadcast %cst_28 : f32 to vector<8x8xf32>
    %59 = arith.select %14, %57, %58 : vector<8x8xi1>, vector<8x8xf32>
    %cst_29 = arith.constant dense<0xFF800000> : vector<8xf32>
    %60 = vector.multi_reduction <maximumf>, %59, %cst_29 [1] : vector<8x8xf32> to vector<8xf32>
    %61 = vector.shape_cast %60 : vector<8xf32> to vector<8x1xf32>
    %62 = vector.broadcast %61 : vector<8x1xf32> to vector<8x8xf32>
    %63 = arith.subf %59, %62 : vector<8x8xf32>
    %64 = math.exp %63 : vector<8x8xf32>
    %cst_30 = arith.constant dense<0.000000e+00> : vector<8xf32>
    %65 = vector.multi_reduction <add>, %64, %cst_30 [1] : vector<8x8xf32> to vector<8xf32>
    %66 = vector.shape_cast %65 : vector<8xf32> to vector<8x1xf32>
    %67 = tpu.reciprocal %66 {approx = true} : vector<8x1xf32> -> vector<8x1xf32>
    %68 = vector.broadcast %67 : vector<8x1xf32> to vector<8x8xf32>
    %69 = arith.mulf %64, %68 : vector<8x8xf32>
    %cst_31 = arith.constant dense<0.000000e+00> : vector<8x32xf32>
    %70 = tpu.matmul %69, %56, %cst_31 {dimension_numbers = #tpu.dot_dimension_numbers<[1], [0], [0], [1], [0, 0, 1, 1], [], []>} : vector<8x8xf32>, vector<8x32xf32>, vector<8x32xf32> -> vector<8x32xf32>
    %71 = arith.addf %53, %70 : vector<8x32xf32>
    %72 = vector.extract_strided_slice %18 {offsets = [0, 24], sizes = [8, 8], strides = [1, 1]} : vector<8x192xf32> to vector<8x8xf32>
    %73 = vector.extract_strided_slice %18 {offsets = [0, 56], sizes = [8, 8], strides = [1, 1]} : vector<8x192xf32> to vector<8x8xf32>
    %74 = vector.extract_strided_slice %18 {offsets = [0, 160], sizes = [8, 32], strides = [1, 1]} : vector<8x192xf32> to vector<8x32xf32>
    "tpu.trace_start"() <{level = 10 : i32, message = "qe,ke->qk"}> : () -> ()
    %cst_32 = arith.constant dense<0.000000e+00> : vector<8x8xf32>
    %75 = tpu.matmul %72, %73, %cst_32 {dimension_numbers = #tpu.dot_dimension_numbers<[1], [1], [0], [0], [0, 0, 1, 0], [], []>} : vector<8x8xf32>, vector<8x8xf32>, vector<8x8xf32> -> vector<8x8xf32>
    %cst_33 = arith.constant -1.000000e+06 : f32
    "tpu.trace_stop"() : () -> ()
    %76 = vector.broadcast %cst_33 : f32 to vector<8x8xf32>
    %77 = arith.select %14, %75, %76 : vector<8x8xi1>, vector<8x8xf32>
    %cst_34 = arith.constant dense<0xFF800000> : vector<8xf32>
    %78 = vector.multi_reduction <maximumf>, %77, %cst_34 [1] : vector<8x8xf32> to vector<8xf32>
    %79 = vector.shape_cast %78 : vector<8xf32> to vector<8x1xf32>
    %80 = vector.broadcast %79 : vector<8x1xf32> to vector<8x8xf32>
    %81 = arith.subf %77, %80 : vector<8x8xf32>
    %82 = math.exp %81 : vector<8x8xf32>
    %cst_35 = arith.constant dense<0.000000e+00> : vector<8xf32>
    %83 = vector.multi_reduction <add>, %82, %cst_35 [1] : vector<8x8xf32> to vector<8xf32>
    %84 = vector.shape_cast %83 : vector<8xf32> to vector<8x1xf32>
    %85 = tpu.reciprocal %84 {approx = true} : vector<8x1xf32> -> vector<8x1xf32>
    %86 = vector.broadcast %85 : vector<8x1xf32> to vector<8x8xf32>
    %87 = arith.mulf %82, %86 : vector<8x8xf32>
    %cst_36 = arith.constant dense<0.000000e+00> : vector<8x32xf32>
    %88 = tpu.matmul %87, %74, %cst_36 {dimension_numbers = #tpu.dot_dimension_numbers<[1], [0], [0], [1], [0, 0, 1, 1], [], []>} : vector<8x8xf32>, vector<8x32xf32>, vector<8x32xf32> -> vector<8x32xf32>
    %89 = arith.addf %71, %88 : vector<8x32xf32>
    %90 = arith.addf %89, %16 : vector<8x32xf32>
    %cst_37 = arith.constant dense<0.000000e+00> : vector<8xf32>
    %91 = vector.multi_reduction <add>, %90, %cst_37 [1] : vector<8x32xf32> to vector<8xf32>
    %92 = vector.shape_cast %91 : vector<8xf32> to vector<8x1xf32>
    %93 = arith.mulf %90, %90 : vector<8x32xf32>
    %cst_38 = arith.constant dense<0.000000e+00> : vector<8xf32>
    %94 = vector.multi_reduction <add>, %93, %cst_38 [1] : vector<8x32xf32> to vector<8xf32>
    %95 = vector.shape_cast %94 : vector<8xf32> to vector<8x1xf32>
    %cst_39 = arith.constant dense<0.000000e+00> : vector<1xf32>
    %96 = vector.multi_reduction <add>, %92, %cst_39 [0] : vector<8x1xf32> to vector<1xf32>
    %97 = vector.shape_cast %96 : vector<1xf32> to vector<1x1xf32>
    %cst_40 = arith.constant 3.906250e-03 : f32
    %98 = vector.broadcast %cst_40 : f32 to vector<1x1xf32>
    %99 = arith.mulf %97, %98 : vector<1x1xf32>
    %cst_41 = arith.constant dense<0.000000e+00> : vector<1xf32>
    %100 = vector.multi_reduction <add>, %95, %cst_41 [0] : vector<8x1xf32> to vector<1xf32>
    %101 = vector.shape_cast %100 : vector<1xf32> to vector<1x1xf32>
    %cst_42 = arith.constant 3.906250e-03 : f32
    %102 = vector.broadcast %cst_42 : f32 to vector<1x1xf32>
    %103 = arith.mulf %101, %102 : vector<1x1xf32>
    %104 = arith.mulf %99, %99 : vector<1x1xf32>
    %105 = arith.subf %103, %104 : vector<1x1xf32>
    %cst_43 = arith.constant 0.000000e+00 : f32
    %106 = vector.broadcast %cst_43 : f32 to vector<1x1xf32>
    %107 = arith.maximumf %105, %106 : vector<1x1xf32>
    %108 = vector.broadcast %99 : vector<1x1xf32> to vector<8x32xf32>
    %109 = arith.subf %90, %108 : vector<8x32xf32>
    %cst_44 = arith.constant 9.99999974E-6 : f32
    %110 = vector.broadcast %cst_44 : f32 to vector<1x1xf32>
    %111 = arith.addf %107, %110 : vector<1x1xf32>
    %112 = math.rsqrt %111 : vector<1x1xf32>
    %113 = vector.broadcast %112 : vector<1x1xf32> to vector<8x32xf32>
    %114 = arith.mulf %109, %113 : vector<8x32xf32>
    %115 = arith.mulf %114, %3 : vector<8x32xf32>
    %116 = arith.addf %115, %5 : vector<8x32xf32>
    %117 = arith.truncf %116 : vector<8x32xf32> to vector<8x32xbf16>
    %cst_45 = arith.constant dense<0.000000e+00> : vector<8x32xf32>
    %118 = tpu.matmul %117, %1, %cst_45 {dimension_numbers = #tpu.dot_dimension_numbers<[1], [0], [0], [1], [0, 0, 1, 1], [], []>} : vector<8x32xbf16>, vector<32x32xbf16>, vector<8x32xf32> -> vector<8x32xf32>
    %119 = arith.addf %118, %11 : vector<8x32xf32>
    %120 = arith.addf %119, %116 : vector<8x32xf32>
    %cst_46 = arith.constant dense<0.000000e+00> : vector<8xf32>
    %121 = vector.multi_reduction <add>, %120, %cst_46 [1] : vector<8x32xf32> to vector<8xf32>
    %122 = vector.shape_cast %121 : vector<8xf32> to vector<8x1xf32>
    %123 = arith.mulf %120, %120 : vector<8x32xf32>
    %cst_47 = arith.constant dense<0.000000e+00> : vector<8xf32>
    %124 = vector.multi_reduction <add>, %123, %cst_47 [1] : vector<8x32xf32> to vector<8xf32>
    %125 = vector.shape_cast %124 : vector<8xf32> to vector<8x1xf32>
    %cst_48 = arith.constant dense<0.000000e+00> : vector<1xf32>
    %126 = vector.multi_reduction <add>, %122, %cst_48 [0] : vector<8x1xf32> to vector<1xf32>
    %127 = vector.shape_cast %126 : vector<1xf32> to vector<1x1xf32>
    %cst_49 = arith.constant 3.906250e-03 : f32
    %128 = vector.broadcast %cst_49 : f32 to vector<1x1xf32>
    %129 = arith.mulf %127, %128 : vector<1x1xf32>
    %cst_50 = arith.constant dense<0.000000e+00> : vector<1xf32>
    %130 = vector.multi_reduction <add>, %125, %cst_50 [0] : vector<8x1xf32> to vector<1xf32>
    %131 = vector.shape_cast %130 : vector<1xf32> to vector<1x1xf32>
    %cst_51 = arith.constant 3.906250e-03 : f32
    %132 = vector.broadcast %cst_51 : f32 to vector<1x1xf32>
    %133 = arith.mulf %131, %132 : vector<1x1xf32>
    %134 = arith.mulf %129, %129 : vector<1x1xf32>
    %135 = arith.subf %133, %134 : vector<1x1xf32>
    %cst_52 = arith.constant 0.000000e+00 : f32
    %136 = vector.broadcast %cst_52 : f32 to vector<1x1xf32>
    %137 = arith.maximumf %135, %136 : vector<1x1xf32>
    %138 = vector.broadcast %129 : vector<1x1xf32> to vector<8x32xf32>
    %139 = arith.subf %120, %138 : vector<8x32xf32>
    %cst_53 = arith.constant 9.99999974E-6 : f32
    %140 = vector.broadcast %cst_53 : f32 to vector<1x1xf32>
    %141 = arith.addf %137, %140 : vector<1x1xf32>
    %142 = math.rsqrt %141 : vector<1x1xf32>
    %143 = vector.broadcast %142 : vector<1x1xf32> to vector<8x32xf32>
    %144 = arith.mulf %139, %143 : vector<8x32xf32>
    %145 = arith.mulf %144, %7 : vector<8x32xf32>
    %146 = arith.addf %145, %9 : vector<8x32xf32>
    %c0_54 = arith.constant 0 : index
    %c0_55 = arith.constant 0 : index
    %c0_56 = arith.constant 0 : index
    %147 = vector.load %arg4[%c0_54, %c0_55, %c0_56] : memref<2x8x32xf32, #tpu.memory_space<vmem>>, vector<1x8x32xf32>
    %148 = vector.shape_cast %147 : vector<1x8x32xf32> to vector<8x32xf32>
    %149 = vector.shape_cast %146 : vector<8x32xf32> to vector<1x8x32xf32>
    tpu.vector_store %arg4[%c0_54, %c0_55, %c0_56], %149 {strides = array<i32>} : memref<2x8x32xf32, #tpu.memory_space<vmem>>, vector<1x8x32xf32>,
    %c1_57 = arith.constant 1 : index
    %c0_58 = arith.constant 0 : index
    %c0_59 = arith.constant 0 : index
    %150 = vector.load %arg0[%c1_57, %c0_58, %c0_59] : memref<2x8x32xf32, #tpu.memory_space<vmem>>, vector<1x8x32xf32>
    %151 = vector.shape_cast %150 : vector<1x8x32xf32> to vector<8x32xf32>
    %152 = arith.truncf %151 : vector<8x32xf32> to vector<8x32xbf16>
    %cst_60 = arith.constant dense<0.000000e+00> : vector<8x192xf32>
    %153 = tpu.matmul %152, %0, %cst_60 {dimension_numbers = #tpu.dot_dimension_numbers<[1], [0], [0], [1], [0, 0, 1, 1], [], []>} : vector<8x32xbf16>, vector<32x192xbf16>, vector<8x192xf32> -> vector<8x192xf32>
    %154 = vector.extract_strided_slice %153 {offsets = [0, 0], sizes = [8, 8], strides = [1, 1]} : vector<8x192xf32> to vector<8x8xf32>
    %155 = vector.extract_strided_slice %153 {offsets = [0, 32], sizes = [8, 8], strides = [1, 1]} : vector<8x192xf32> to vector<8x8xf32>
    %156 = vector.extract_strided_slice %153 {offsets = [0, 64], sizes = [8, 32], strides = [1, 1]} : vector<8x192xf32> to vector<8x32xf32>
    "tpu.trace_start"() <{level = 10 : i32, message = "qe,ke->qk"}> : () -> ()
    %cst_61 = arith.constant dense<0.000000e+00> : vector<8x8xf32>
    %157 = tpu.matmul %154, %155, %cst_61 {dimension_numbers = #tpu.dot_dimension_numbers<[1], [1], [0], [0], [0, 0, 1, 0], [], []>} : vector<8x8xf32>, vector<8x8xf32>, vector<8x8xf32> -> vector<8x8xf32>
    %cst_62 = arith.constant -1.000000e+06 : f32
    "tpu.trace_stop"() : () -> ()
    %158 = vector.broadcast %cst_62 : f32 to vector<8x8xf32>
    %159 = arith.select %14, %157, %158 : vector<8x8xi1>, vector<8x8xf32>
    %cst_63 = arith.constant dense<0xFF800000> : vector<8xf32>
    %160 = vector.multi_reduction <maximumf>, %159, %cst_63 [1] : vector<8x8xf32> to vector<8xf32>
    %161 = vector.shape_cast %160 : vector<8xf32> to vector<8x1xf32>
    %162 = vector.broadcast %161 : vector<8x1xf32> to vector<8x8xf32>
    %163 = arith.subf %159, %162 : vector<8x8xf32>
    %164 = math.exp %163 : vector<8x8xf32>
    %cst_64 = arith.constant dense<0.000000e+00> : vector<8xf32>
    %165 = vector.multi_reduction <add>, %164, %cst_64 [1] : vector<8x8xf32> to vector<8xf32>
    %166 = vector.shape_cast %165 : vector<8xf32> to vector<8x1xf32>
    %167 = tpu.reciprocal %166 {approx = true} : vector<8x1xf32> -> vector<8x1xf32>
    %168 = vector.broadcast %167 : vector<8x1xf32> to vector<8x8xf32>
    %169 = arith.mulf %164, %168 : vector<8x8xf32>
    %cst_65 = arith.constant dense<0.000000e+00> : vector<8x32xf32>
    %170 = tpu.matmul %169, %156, %cst_65 {dimension_numbers = #tpu.dot_dimension_numbers<[1], [0], [0], [1], [0, 0, 1, 1], [], []>} : vector<8x8xf32>, vector<8x32xf32>, vector<8x32xf32> -> vector<8x32xf32>
    %171 = vector.extract_strided_slice %153 {offsets = [0, 8], sizes = [8, 8], strides = [1, 1]} : vector<8x192xf32> to vector<8x8xf32>
    %172 = vector.extract_strided_slice %153 {offsets = [0, 40], sizes = [8, 8], strides = [1, 1]} : vector<8x192xf32> to vector<8x8xf32>
    %173 = vector.extract_strided_slice %153 {offsets = [0, 96], sizes = [8, 32], strides = [1, 1]} : vector<8x192xf32> to vector<8x32xf32>
    "tpu.trace_start"() <{level = 10 : i32, message = "qe,ke->qk"}> : () -> ()
    %cst_66 = arith.constant dense<0.000000e+00> : vector<8x8xf32>
    %174 = tpu.matmul %171, %172, %cst_66 {dimension_numbers = #tpu.dot_dimension_numbers<[1], [1], [0], [0], [0, 0, 1, 0], [], []>} : vector<8x8xf32>, vector<8x8xf32>, vector<8x8xf32> -> vector<8x8xf32>
    %cst_67 = arith.constant -1.000000e+06 : f32
    "tpu.trace_stop"() : () -> ()
    %175 = vector.broadcast %cst_67 : f32 to vector<8x8xf32>
    %176 = arith.select %14, %174, %175 : vector<8x8xi1>, vector<8x8xf32>
    %cst_68 = arith.constant dense<0xFF800000> : vector<8xf32>
    %177 = vector.multi_reduction <maximumf>, %176, %cst_68 [1] : vector<8x8xf32> to vector<8xf32>
    %178 = vector.shape_cast %177 : vector<8xf32> to vector<8x1xf32>
    %179 = vector.broadcast %178 : vector<8x1xf32> to vector<8x8xf32>
    %180 = arith.subf %176, %179 : vector<8x8xf32>
    %181 = math.exp %180 : vector<8x8xf32>
    %cst_69 = arith.constant dense<0.000000e+00> : vector<8xf32>
    %182 = vector.multi_reduction <add>, %181, %cst_69 [1] : vector<8x8xf32> to vector<8xf32>
    %183 = vector.shape_cast %182 : vector<8xf32> to vector<8x1xf32>
    %184 = tpu.reciprocal %183 {approx = true} : vector<8x1xf32> -> vector<8x1xf32>
    %185 = vector.broadcast %184 : vector<8x1xf32> to vector<8x8xf32>
    %186 = arith.mulf %181, %185 : vector<8x8xf32>
    %cst_70 = arith.constant dense<0.000000e+00> : vector<8x32xf32>
    %187 = tpu.matmul %186, %173, %cst_70 {dimension_numbers = #tpu.dot_dimension_numbers<[1], [0], [0], [1], [0, 0, 1, 1], [], []>} : vector<8x8xf32>, vector<8x32xf32>, vector<8x32xf32> -> vector<8x32xf32>
    %188 = arith.addf %170, %187 : vector<8x32xf32>
    %189 = vector.extract_strided_slice %153 {offsets = [0, 16], sizes = [8, 8], strides = [1, 1]} : vector<8x192xf32> to vector<8x8xf32>
    %190 = vector.extract_strided_slice %153 {offsets = [0, 48], sizes = [8, 8], strides = [1, 1]} : vector<8x192xf32> to vector<8x8xf32>
    %191 = vector.extract_strided_slice %153 {offsets = [0, 128], sizes = [8, 32], strides = [1, 1]} : vector<8x192xf32> to vector<8x32xf32>
    "tpu.trace_start"() <{level = 10 : i32, message = "qe,ke->qk"}> : () -> ()
    %cst_71 = arith.constant dense<0.000000e+00> : vector<8x8xf32>
    %192 = tpu.matmul %189, %190, %cst_71 {dimension_numbers = #tpu.dot_dimension_numbers<[1], [1], [0], [0], [0, 0, 1, 0], [], []>} : vector<8x8xf32>, vector<8x8xf32>, vector<8x8xf32> -> vector<8x8xf32>
    %cst_72 = arith.constant -1.000000e+06 : f32
    "tpu.trace_stop"() : () -> ()
    %193 = vector.broadcast %cst_72 : f32 to vector<8x8xf32>
    %194 = arith.select %14, %192, %193 : vector<8x8xi1>, vector<8x8xf32>
    %cst_73 = arith.constant dense<0xFF800000> : vector<8xf32>
    %195 = vector.multi_reduction <maximumf>, %194, %cst_73 [1] : vector<8x8xf32> to vector<8xf32>
    %196 = vector.shape_cast %195 : vector<8xf32> to vector<8x1xf32>
    %197 = vector.broadcast %196 : vector<8x1xf32> to vector<8x8xf32>
    %198 = arith.subf %194, %197 : vector<8x8xf32>
    %199 = math.exp %198 : vector<8x8xf32>
    %cst_74 = arith.constant dense<0.000000e+00> : vector<8xf32>
    %200 = vector.multi_reduction <add>, %199, %cst_74 [1] : vector<8x8xf32> to vector<8xf32>
    %201 = vector.shape_cast %200 : vector<8xf32> to vector<8x1xf32>
    %202 = tpu.reciprocal %201 {approx = true} : vector<8x1xf32> -> vector<8x1xf32>
    %203 = vector.broadcast %202 : vector<8x1xf32> to vector<8x8xf32>
    %204 = arith.mulf %199, %203 : vector<8x8xf32>
    %cst_75 = arith.constant dense<0.000000e+00> : vector<8x32xf32>
    %205 = tpu.matmul %204, %191, %cst_75 {dimension_numbers = #tpu.dot_dimension_numbers<[1], [0], [0], [1], [0, 0, 1, 1], [], []>} : vector<8x8xf32>, vector<8x32xf32>, vector<8x32xf32> -> vector<8x32xf32>
    %206 = arith.addf %188, %205 : vector<8x32xf32>
    %207 = vector.extract_strided_slice %153 {offsets = [0, 24], sizes = [8, 8], strides = [1, 1]} : vector<8x192xf32> to vector<8x8xf32>
    %208 = vector.extract_strided_slice %153 {offsets = [0, 56], sizes = [8, 8], strides = [1, 1]} : vector<8x192xf32> to vector<8x8xf32>
    %209 = vector.extract_strided_slice %153 {offsets = [0, 160], sizes = [8, 32], strides = [1, 1]} : vector<8x192xf32> to vector<8x32xf32>
    "tpu.trace_start"() <{level = 10 : i32, message = "qe,ke->qk"}> : () -> ()
    %cst_76 = arith.constant dense<0.000000e+00> : vector<8x8xf32>
    %210 = tpu.matmul %207, %208, %cst_76 {dimension_numbers = #tpu.dot_dimension_numbers<[1], [1], [0], [0], [0, 0, 1, 0], [], []>} : vector<8x8xf32>, vector<8x8xf32>, vector<8x8xf32> -> vector<8x8xf32>
    %cst_77 = arith.constant -1.000000e+06 : f32
    "tpu.trace_stop"() : () -> ()
    %211 = vector.broadcast %cst_77 : f32 to vector<8x8xf32>
    %212 = arith.select %14, %210, %211 : vector<8x8xi1>, vector<8x8xf32>
    %cst_78 = arith.constant dense<0xFF800000> : vector<8xf32>
    %213 = vector.multi_reduction <maximumf>, %212, %cst_78 [1] : vector<8x8xf32> to vector<8xf32>
    %214 = vector.shape_cast %213 : vector<8xf32> to vector<8x1xf32>
    %215 = vector.broadcast %214 : vector<8x1xf32> to vector<8x8xf32>
    %216 = arith.subf %212, %215 : vector<8x8xf32>
    %217 = math.exp %216 : vector<8x8xf32>
    %cst_79 = arith.constant dense<0.000000e+00> : vector<8xf32>
    %218 = vector.multi_reduction <add>, %217, %cst_79 [1] : vector<8x8xf32> to vector<8xf32>
    %219 = vector.shape_cast %218 : vector<8xf32> to vector<8x1xf32>
    %220 = tpu.reciprocal %219 {approx = true} : vector<8x1xf32> -> vector<8x1xf32>
    %221 = vector.broadcast %220 : vector<8x1xf32> to vector<8x8xf32>
    %222 = arith.mulf %217, %221 : vector<8x8xf32>
    %cst_80 = arith.constant dense<0.000000e+00> : vector<8x32xf32>
    %223 = tpu.matmul %222, %209, %cst_80 {dimension_numbers = #tpu.dot_dimension_numbers<[1], [0], [0], [1], [0, 0, 1, 1], [], []>} : vector<8x8xf32>, vector<8x32xf32>, vector<8x32xf32> -> vector<8x32xf32>
    %224 = arith.addf %206, %223 : vector<8x32xf32>
    %225 = arith.addf %224, %151 : vector<8x32xf32>
    %cst_81 = arith.constant dense<0.000000e+00> : vector<8xf32>
    %226 = vector.multi_reduction <add>, %225, %cst_81 [1] : vector<8x32xf32> to vector<8xf32>
    %227 = vector.shape_cast %226 : vector<8xf32> to vector<8x1xf32>
    %228 = arith.mulf %225, %225 : vector<8x32xf32>
    %cst_82 = arith.constant dense<0.000000e+00> : vector<8xf32>
    %229 = vector.multi_reduction <add>, %228, %cst_82 [1] : vector<8x32xf32> to vector<8xf32>
    %230 = vector.shape_cast %229 : vector<8xf32> to vector<8x1xf32>
    %cst_83 = arith.constant dense<0.000000e+00> : vector<1xf32>
    %231 = vector.multi_reduction <add>, %227, %cst_83 [0] : vector<8x1xf32> to vector<1xf32>
    %232 = vector.shape_cast %231 : vector<1xf32> to vector<1x1xf32>
    %cst_84 = arith.constant 3.906250e-03 : f32
    %233 = vector.broadcast %cst_84 : f32 to vector<1x1xf32>
    %234 = arith.mulf %232, %233 : vector<1x1xf32>
    %cst_85 = arith.constant dense<0.000000e+00> : vector<1xf32>
    %235 = vector.multi_reduction <add>, %230, %cst_85 [0] : vector<8x1xf32> to vector<1xf32>
    %236 = vector.shape_cast %235 : vector<1xf32> to vector<1x1xf32>
    %cst_86 = arith.constant 3.906250e-03 : f32
    %237 = vector.broadcast %cst_86 : f32 to vector<1x1xf32>
    %238 = arith.mulf %236, %237 : vector<1x1xf32>
    %239 = arith.mulf %234, %234 : vector<1x1xf32>
    %240 = arith.subf %238, %239 : vector<1x1xf32>
    %cst_87 = arith.constant 0.000000e+00 : f32
    %241 = vector.broadcast %cst_87 : f32 to vector<1x1xf32>
    %242 = arith.maximumf %240, %241 : vector<1x1xf32>
    %243 = vector.broadcast %234 : vector<1x1xf32> to vector<8x32xf32>
    %244 = arith.subf %225, %243 : vector<8x32xf32>
    %cst_88 = arith.constant 9.99999974E-6 : f32
    %245 = vector.broadcast %cst_88 : f32 to vector<1x1xf32>
    %246 = arith.addf %242, %245 : vector<1x1xf32>
    %247 = math.rsqrt %246 : vector<1x1xf32>
    %248 = vector.broadcast %247 : vector<1x1xf32> to vector<8x32xf32>
    %249 = arith.mulf %244, %248 : vector<8x32xf32>
    %250 = arith.mulf %249, %3 : vector<8x32xf32>
    %251 = arith.addf %250, %5 : vector<8x32xf32>
    %252 = arith.truncf %251 : vector<8x32xf32> to vector<8x32xbf16>
    %cst_89 = arith.constant dense<0.000000e+00> : vector<8x32xf32>
    %253 = tpu.matmul %252, %1, %cst_89 {dimension_numbers = #tpu.dot_dimension_numbers<[1], [0], [0], [1], [0, 0, 1, 1], [], []>} : vector<8x32xbf16>, vector<32x32xbf16>, vector<8x32xf32> -> vector<8x32xf32>
    %254 = arith.addf %253, %11 : vector<8x32xf32>
    %255 = arith.addf %254, %251 : vector<8x32xf32>
    %cst_90 = arith.constant dense<0.000000e+00> : vector<8xf32>
    %256 = vector.multi_reduction <add>, %255, %cst_90 [1] : vector<8x32xf32> to vector<8xf32>
    %257 = vector.shape_cast %256 : vector<8xf32> to vector<8x1xf32>
    %258 = arith.mulf %255, %255 : vector<8x32xf32>
    %cst_91 = arith.constant dense<0.000000e+00> : vector<8xf32>
    %259 = vector.multi_reduction <add>, %258, %cst_91 [1] : vector<8x32xf32> to vector<8xf32>
    %260 = vector.shape_cast %259 : vector<8xf32> to vector<8x1xf32>
    %cst_92 = arith.constant dense<0.000000e+00> : vector<1xf32>
    %261 = vector.multi_reduction <add>, %257, %cst_92 [0] : vector<8x1xf32> to vector<1xf32>
    %262 = vector.shape_cast %261 : vector<1xf32> to vector<1x1xf32>
    %cst_93 = arith.constant 3.906250e-03 : f32
    %263 = vector.broadcast %cst_93 : f32 to vector<1x1xf32>
    %264 = arith.mulf %262, %263 : vector<1x1xf32>
    %cst_94 = arith.constant dense<0.000000e+00> : vector<1xf32>
    %265 = vector.multi_reduction <add>, %260, %cst_94 [0] : vector<8x1xf32> to vector<1xf32>
    %266 = vector.shape_cast %265 : vector<1xf32> to vector<1x1xf32>
    %cst_95 = arith.constant 3.906250e-03 : f32
    %267 = vector.broadcast %cst_95 : f32 to vector<1x1xf32>
    %268 = arith.mulf %266, %267 : vector<1x1xf32>
    %269 = arith.mulf %264, %264 : vector<1x1xf32>
    %270 = arith.subf %268, %269 : vector<1x1xf32>
    %cst_96 = arith.constant 0.000000e+00 : f32
    %271 = vector.broadcast %cst_96 : f32 to vector<1x1xf32>
    %272 = arith.maximumf %270, %271 : vector<1x1xf32>
    %273 = vector.broadcast %264 : vector<1x1xf32> to vector<8x32xf32>
    %274 = arith.subf %255, %273 : vector<8x32xf32>
    %cst_97 = arith.constant 9.99999974E-6 : f32
    %275 = vector.broadcast %cst_97 : f32 to vector<1x1xf32>
    %276 = arith.addf %272, %275 : vector<1x1xf32>
    %277 = math.rsqrt %276 : vector<1x1xf32>
    %278 = vector.broadcast %277 : vector<1x1xf32> to vector<8x32xf32>
    %279 = arith.mulf %274, %278 : vector<8x32xf32>
    %280 = arith.mulf %279, %7 : vector<8x32xf32>
    %281 = arith.addf %280, %9 : vector<8x32xf32>
    %c1_98 = arith.constant 1 : index
    %c0_99 = arith.constant 0 : index
    %c0_100 = arith.constant 0 : index
    %282 = vector.load %arg4[%c1_98, %c0_99, %c0_100] : memref<2x8x32xf32, #tpu.memory_space<vmem>>, vector<1x8x32xf32>
    %283 = vector.shape_cast %282 : vector<1x8x32xf32> to vector<8x32xf32>
    %284 = vector.shape_cast %281 : vector<8x32xf32> to vector<1x8x32xf32>
    tpu.vector_store %arg4[%c1_98, %c0_99, %c0_100], %284 {strides = array<i32>} : memref<2x8x32xf32, #tpu.memory_space<vmem>>, vector<1x8x32xf32>,
    return
  }
}

</mosaic_0001>

<llo_original>
// kernel: tpu_custom_call.1
$region0: #{tpu_custom_call.1}
  #allocation0 [shape = 'u32[]', space=smem, size = 0x4, offset = 0x4, fixed_abs, tag = 'smem constant byte address 0x4 - core index']
  #allocation1 [shape = 'u32[144,128]{1,0:T(1,128)}', space=vmem, size = 0x12000, scoped, tag = 'internal scratch']
  %s0 = inlined_call_operand.hbm [shape: f32[2,8,32], index: 0, kind: input, shape index: {}]
  %s1 = inlined_call_operand.hbm [shape: bf16[32,192], index: 1, kind: input, shape index: {}]
  %s2 = inlined_call_operand.hbm [shape: bf16[32,32], index: 2, kind: input, shape index: {}]
  %s3 = inlined_call_operand.hbm [shape: f32[5,8,32], index: 3, kind: input, shape index: {}]
  %s4 = inlined_call_operand.hbm [shape: f32[2,8,32], index: 4, kind: output, shape index: {}]
  %s5 = sld [smem:[#allocation0]]
  $region42: #{tpu_custom_call.1} parent=0
    _
  %s7 = ssub.s32 1, %s5
  %s8 = scalar_select 0, %s7, %s5
  $region1: #{tpu_custom_call.1} parent=0
    #allocation2 [shape = 'u8[8192]{0}', space=vmem, size = 0x2000, scoped, tag = 'input window, operand 0, single buffered']
    #allocation3 [shape = 's32[1]{0}', space=sflag, size = 0x4, scoped, tag = 'scoped memory for tpu_custom_call.1']
    #allocation4 [shape = 's32[1]{0}', space=sflag, size = 0x4, scoped, tag = 'scoped memory for tpu_custom_call.1']
    #allocation5 [shape = 'u8[16384]{0}', space=vmem, size = 0x4000, scoped, tag = 'input window, operand 1, single buffered']
    #allocation6 [shape = 's32[1]{0}', space=sflag, size = 0x4, scoped, tag = 'scoped memory for tpu_custom_call.1']
    #allocation7 [shape = 'u8[8192]{0}', space=vmem, size = 0x2000, scoped, tag = 'input window, operand 2, single buffered']
    #allocation8 [shape = 'u8[20480]{0}', space=vmem, size = 0x5000, scoped, tag = 'input window, operand 3, single buffered']
    #allocation9 [shape = 's32[1]{0}', space=sflag, size = 0x4, scoped, tag = 'scoped memory for tpu_custom_call.1']
    #allocation10 [shape = 'u8[8192]{0}', space=vmem, size = 0x2000, scoped, tag = 'output window, operand 0, single buffered']
    %9 = vsyncpa [#allocation3], 0
    %10 = vsyncpa [#allocation6], 0
    %11 = vsyncpa [#allocation9], 0
    %12 = vsyncpa [#allocation4], 0
    // Predicated region
    $region2: #{tpu_custom_call.1} parent=1 // pred_check
      _
    $region3: #{tpu_custom_call.1} parent=1 // pred_check_branch
      %14 = sbr.rel (0) target = $region5
    $region4: #{tpu_custom_call.1} parent=1 // pred_region
      %s16 = ssub.s32 256, 256
      %17 = vsyncadd [#allocation3], %s16
      %s18 = sshll.u32 [#allocation2], 4
      %s19 = int_to_ptr.vmem [resolvable:$true] %s18
      %24 = dma.hbm_to_vmem [thread:$0]  %s0, 256, %s19, [#allocation3], 128, 128, 8
    $region5: #{tpu_custom_call.1} parent=1 // pred_fallthru
      _
    // Predicated region
    $region6: #{tpu_custom_call.1} parent=1 // pred_check
      _
    $region7: #{tpu_custom_call.1} parent=1 // pred_check_branch
      %26 = sbr.rel (0) target = $region9
    $region8: #{tpu_custom_call.1} parent=1 // pred_region
      %s28 = ssub.s32 512, 512
      %29 = vsyncadd [#allocation6], %s28
      %s30 = sshll.u32 [#allocation5], 4
      %s31 = int_to_ptr.vmem [resolvable:$true] %s30
      %36 = dma.hbm_to_vmem [thread:$0]  %s1, 512, %s31, [#allocation6], 128, 128, 8
    $region9: #{tpu_custom_call.1} parent=1 // pred_fallthru
      _
    // Predicated region
    $region10: #{tpu_custom_call.1} parent=1 // pred_check
      _
    $region11: #{tpu_custom_call.1} parent=1 // pred_check_branch
      %38 = sbr.rel (0) target = $region13
    $region12: #{tpu_custom_call.1} parent=1 // pred_region
      %s40 = ssub.s32 256, 256
      %41 = vsyncadd [#allocation6], %s40
      %s42 = sshll.u32 [#allocation7], 4
      %s43 = int_to_ptr.vmem [resolvable:$true] %s42
      %48 = dma.hbm_to_vmem [thread:$0]  %s2, 256, %s43, [#allocation6], 64, 64, 4
    $region13: #{tpu_custom_call.1} parent=1 // pred_fallthru
      _
    // Predicated region
    $region14: #{tpu_custom_call.1} parent=1 // pred_check
      _
    $region15: #{tpu_custom_call.1} parent=1 // pred_check_branch
      %50 = sbr.rel (0) target = $region17
    $region16: #{tpu_custom_call.1} parent=1 // pred_region
      %s52 = ssub.s32 640, 640
      %53 = vsyncadd [#allocation9], %s52
      %s54 = sshll.u32 [#allocation8], 4
      %s55 = int_to_ptr.vmem [resolvable:$true] %s54
      %60 = dma.hbm_to_vmem [thread:$0]  %s3, 640, %s55, [#allocation9], 128, 128, 8
    $region17: #{tpu_custom_call.1} parent=1 // pred_fallthru
      _
    // Predicated region
    $region18: #{tpu_custom_call.1} parent=1 // pred_check
      _
    $region19: #{tpu_custom_call.1} parent=1 // pred_check_branch
      %62 = sbr.rel (0) target = $region21
    $region20: #{tpu_custom_call.1} parent=1 // pred_region
      %63 = dma.done [#allocation3], 256
    $region21: #{tpu_custom_call.1} parent=1 // pred_fallthru
      _
    // Predicated region
    $region22: #{tpu_custom_call.1} parent=1 // pred_check
      _
    $region23: #{tpu_custom_call.1} parent=1 // pred_check_branch
      %65 = sbr.rel (0) target = $region25
    $region24: #{tpu_custom_call.1} parent=1 // pred_region
      %66 = dma.done [#allocation6], 512
    $region25: #{tpu_custom_call.1} parent=1 // pred_fallthru
      _
    // Predicated region
    $region26: #{tpu_custom_call.1} parent=1 // pred_check
      _
    $region27: #{tpu_custom_call.1} parent=1 // pred_check_branch
      %68 = sbr.rel (0) target = $region29
    $region28: #{tpu_custom_call.1} parent=1 // pred_region
      %69 = dma.done [#allocation6], 256
    $region29: #{tpu_custom_call.1} parent=1 // pred_fallthru
      _
    // Predicated region
    $region30: #{tpu_custom_call.1} parent=1 // pred_check
      _
    $region31: #{tpu_custom_call.1} parent=1 // pred_check_branch
      %71 = sbr.rel (0) target = $region33
    $region32: #{tpu_custom_call.1} parent=1 // pred_region
      %72 = dma.done [#allocation9], 640
    $region33: #{tpu_custom_call.1} parent=1 // pred_fallthru
      _
    %v74 = vld [vmem:[#allocation5] sm:$0xff]
    %v75 = vld [vmem:[#allocation5 + $0x8] sm:$0xff]
    %v76 = vld [vmem:[#allocation5 + $0x10] sm:$0xff]
    %v77 = vld [vmem:[#allocation5 + $0x18] sm:$0xff]
    %v78 = vld [vmem:[#allocation7] sm:$0xf]
    %v79 = vld [vmem:[#allocation7 + $0x4] sm:$0xf]
    %v80 = vld [vmem:[#allocation7 + $0x8] sm:$0xf]
    %v81 = vld [vmem:[#allocation7 + $0xc] sm:$0xf]
    %v82 = vld [vmem:[#allocation8] sm:$0xff]
    %s83 = scalar_lea.vmem [#allocation8], 8
    %v84 = vld [vmem:[%s83] sm:$0xff]
    %s85 = scalar_lea.vmem [#allocation8], 16
    %v86 = vld [vmem:[%s85] sm:$0xff]
    %s87 = scalar_lea.vmem [#allocation8], 24
    %v88 = vld [vmem:[%s87] sm:$0xff]
    %s89 = scalar_lea.vmem [#allocation8], 32
    %v90 = vld [vmem:[%s89] sm:$0xff]
    %v91 = vlaneseq
    %v92 = vshrl.u32 %v91, 7
    %v93 = vlaneseq
    %v94 = vand.u32 %v93, 127
    %vm95 = vcmp.ge.s32.totalorder %v92, %v94
    %v96 = vld [vmem:[#allocation2] sm:$0xff]
    %v97 = vpack.c.bf16 %v96, %v96
    %v102 = vunpack.c.l.b16 %v74
    %v103 = vunpack.c.h.b16 %v74
    %v104 = vunpack.c.l.b16 %v75
    %v105 = vunpack.c.h.b16 %v75
    %v106 = vunpack.c.l.b16 %v76
    %v107 = vunpack.c.h.b16 %v76
    %v108 = vunpack.c.l.b16 %v77
    %v109 = vunpack.c.h.b16 %v77
    %v110 = vpack.c.b16 %v104, %v102
    %v111 = vpack.c.b16 %v105, %v103
    %v112 = vpack.c.b16 %v108, %v106
    %v113 = vpack.c.b16 %v109, %v107
    %vm118 = vcmask 261120
    %v120 = vsel %vm118, %v97, 0
    %122 = vmatprep.subr.bf16.mxu0 %v111
    %123 = vmatpush1.bf16.msra.mxu0 %v110
    %124 = vmatprep.subr.bf16.mxu0 %v113
    %125 = vmatpush1.bf16.msra.mxu0 %v112
    %126 = vmatprep.subr.bf16.mxu0 0
    %127 = vmatpush1.bf16.msra.mxu0 0
    %128 = vmatprep.subr.bf16.mxu0 0
    %129 = vmatpush1.bf16.msra.mxu0 0
    %130 = vmatprep.subr.bf16.mxu0 0
    %131 = vmatpush1.bf16.msra.mxu0 0
    %132 = vmatprep.subr.bf16.mxu0 0
    %133 = vmatpush1.bf16.msra.mxu0 0
    %134 = vmatprep.subr.bf16.mxu0 0
    %135 = vmatpush1.bf16.msra.mxu0 0
    %136 = vmatprep.subr.bf16.mxu0 0
    %137 = vmatpush1.bf16.msra.mxu0 0
    %138 = vmatprep.subr.bf16.mxu0 0
    %139 = vmatpush1.bf16.msra.mxu0 0
    %140 = vmatprep.subr.bf16.mxu0 0
    %141 = vmatpush1.bf16.msra.mxu0 0
    %142 = vmatprep.subr.bf16.mxu0 0
    %143 = vmatpush1.bf16.msra.mxu0 0
    %144 = vmatprep.subr.bf16.mxu0 0
    %145 = vmatpush1.bf16.msra.mxu0 0
    %146 = vmatprep.subr.bf16.mxu0 0
    %147 = vmatpush1.bf16.msra.mxu0 0
    %148 = vmatprep.subr.bf16.mxu0 0
    %149 = vmatpush1.bf16.msra.mxu0 0
    %150 = vmatprep.subr.bf16.mxu0 0
    %151 = vmatpush1.bf16.msra.mxu0 0
    %152 = vmatprep.subr.bf16.mxu0 0
    %153 = vmatpush1.bf16.msra.mxu0 0
    %154 = vmatprep.mubr.bf16.mxu0 0
    %155 = vmatmul.mubr.bf16.gmra.mrb[0].mxu0 %v120
    %v156 = vpop.f32.mrb[0].mxu0
    %v157 = vadd.f32 0.0, %v156
    %v158 = vpop.f32.mrb[0].mxu0
    %v159 = vadd.f32 0.0, %v158
    %v160 = vpop.f32.mrb[0].mxu0
    %v161 = vpop.f32.mrb[0].mxu0
    %162 = vdwg.mxu0
    %164 = vrot.lane.b32.xlu0 %v157, 96
    %v165 = vpop.permute.xlu0 %164
    %vm166 = vcmask 64512
    %v167 = vsel %vm166, %v157, 0
    %v169 = vsel %vm166, %v165, 0
    %171 = vmatprep.subr.mxu0 0.0
    %172 = vmatpush1.xpose.msra.mxu0 %v169
    %173 = vmatprep.subr.mxu0 0.0
    %174 = vmatpush1.xpose.msra.mxu0 0.0
    %175 = vmatprep.subr.mxu0 0.0
    %176 = vmatpush1.xpose.msra.mxu0 0.0
    %177 = vmatprep.subr.mxu0 0.0
    %178 = vmatpush1.xpose.msra.mxu0 0.0
    %179 = vmatprep.subr.mxu0 0.0
    %180 = vmatpush1.xpose.msra.mxu0 0.0
    %181 = vmatprep.subr.mxu0 0.0
    %182 = vmatpush1.xpose.msra.mxu0 0.0
    %183 = vmatprep.subr.mxu0 0.0
    %184 = vmatpush1.xpose.msra.mxu0 0.0
    %185 = vmatprep.subr.mxu0 0.0
    %186 = vmatpush1.xpose.msra.mxu0 0.0
    %187 = vmatprep.subr.mxu0 0.0
    %188 = vmatpush1.xpose.msra.mxu0 0.0
    %189 = vmatprep.subr.mxu0 0.0
    %190 = vmatpush1.xpose.msra.mxu0 0.0
    %191 = vmatprep.subr.mxu0 0.0
    %192 = vmatpush1.xpose.msra.mxu0 0.0
    %193 = vmatprep.subr.mxu0 0.0
    %194 = vmatpush1.xpose.msra.mxu0 0.0
    %195 = vmatprep.subr.mxu0 0.0
    %196 = vmatpush1.xpose.msra.mxu0 0.0
    %197 = vmatprep.subr.mxu0 0.0
    %198 = vmatpush1.xpose.msra.mxu0 0.0
    %199 = vmatprep.subr.mxu0 0.0
    %200 = vmatpush1.xpose.msra.mxu0 0.0
    %201 = vmatprep.subr.mxu0 0.0
    %202 = vmatpush1.xpose.msra.mxu0 0.0
    %203 = vmatprep.subr.mxu0 0.0
    %204 = vmatpush1.xpose.msra.mxu0 0.0
    %205 = vmatprep.subr.mxu0 0.0
    %206 = vmatpush1.xpose.msra.mxu0 0.0
    %207 = vmatprep.subr.mxu0 0.0
    %208 = vmatpush1.xpose.msra.mxu0 0.0
    %209 = vmatprep.subr.mxu0 0.0
    %210 = vmatpush1.xpose.msra.mxu0 0.0
    %211 = vmatprep.subr.mxu0 0.0
    %212 = vmatpush1.xpose.msra.mxu0 0.0
    %213 = vmatprep.subr.mxu0 0.0
    %214 = vmatpush1.xpose.msra.mxu0 0.0
    %215 = vmatprep.subr.mxu0 0.0
    %216 = vmatpush1.xpose.msra.mxu0 0.0
    %217 = vmatprep.subr.mxu0 0.0
    %218 = vmatpush1.xpose.msra.mxu0 0.0
    %219 = vmatprep.subr.mxu0 0.0
    %220 = vmatpush1.xpose.msra.mxu0 0.0
    %221 = vmatprep.subr.mxu0 0.0
    %222 = vmatpush1.xpose.msra.mxu0 0.0
    %223 = vmatprep.subr.mxu0 0.0
    %224 = vmatpush1.xpose.msra.mxu0 0.0
    %225 = vmatprep.subr.mxu0 0.0
    %226 = vmatpush1.xpose.msra.mxu0 0.0
    %227 = vmatprep.subr.mxu0 0.0
    %228 = vmatpush1.xpose.msra.mxu0 0.0
    %229 = vmatprep.subr.mxu0 0.0
    %230 = vmatpush1.xpose.msra.mxu0 0.0
    %231 = vmatprep.subr.mxu0 0.0
    %232 = vmatpush1.xpose.msra.mxu0 0.0
    %233 = vmatprep.subr.mxu0 0.0
    %234 = vmatpush1.xpose.msra.mxu0 0.0
    %235 = vmatprep.mubr.f32.mxu0 0.0
    %236 = vmatmul.mubr.f32.gmra.mrb[0].mxu0 %v167
    %v237 = vpop.f32.mrb[0].mxu0
    %v238 = vadd.f32 0.0, %v237
    %v239 = vpop.f32.mrb[0].mxu0
    %240 = vdwg.mxu0
    %v241 = vsel %vm95, %v238, -1000000.0
    %v242 = vsel %vm166, %v241, -inf
    %243 = vmax.xlane.f32.xlu0 %v242
    %v244 = vpop.xlane.xlu0 %243
    %v245 = vsub.f32 %v241, %v244
    %v246 = vmul.f32 %v245, 1.442695
    %v247 = vpow.pop %v246
    %v248 = vsel %vm166, %v247, 0.0
    %249 = vadd.xlane.f32.xlu0 %v248
    %v250 = vpop.xlane.xlu0 %249
    %v251 = vrcp.pop %v250
    %v252 = vmul.f32 %v247, %v251
    %253 = vrot.lane.b32.xlu0 %v157, 120
    %v254 = vpop.permute.xlu0 %253
    %255 = vrot.lane.b32.xlu0 %v157, 88
    %v256 = vpop.permute.xlu0 %255
    %v257 = vsel %vm166, %v254, 0
    %v259 = vsel %vm166, %v256, 0
    %261 = vmatprep.subr.mxu0 0.0
    %262 = vmatpush1.xpose.msra.mxu0 %v259
    %263 = vmatprep.subr.mxu0 0.0
    %264 = vmatpush1.xpose.msra.mxu0 0.0
    %265 = vmatprep.subr.mxu0 0.0
    %266 = vmatpush1.xpose.msra.mxu0 0.0
    %267 = vmatprep.subr.mxu0 0.0
    %268 = vmatpush1.xpose.msra.mxu0 0.0
    %269 = vmatprep.subr.mxu0 0.0
    %270 = vmatpush1.xpose.msra.mxu0 0.0
    %271 = vmatprep.subr.mxu0 0.0
    %272 = vmatpush1.xpose.msra.mxu0 0.0
    %273 = vmatprep.subr.mxu0 0.0
    %274 = vmatpush1.xpose.msra.mxu0 0.0
    %275 = vmatprep.subr.mxu0 0.0
    %276 = vmatpush1.xpose.msra.mxu0 0.0
    %277 = vmatprep.subr.mxu0 0.0
    %278 = vmatpush1.xpose.msra.mxu0 0.0
    %279 = vmatprep.subr.mxu0 0.0
    %280 = vmatpush1.xpose.msra.mxu0 0.0
    %281 = vmatprep.subr.mxu0 0.0
    %282 = vmatpush1.xpose.msra.mxu0 0.0
    %283 = vmatprep.subr.mxu0 0.0
    %284 = vmatpush1.xpose.msra.mxu0 0.0
    %285 = vmatprep.subr.mxu0 0.0
    %286 = vmatpush1.xpose.msra.mxu0 0.0
    %287 = vmatprep.subr.mxu0 0.0
    %288 = vmatpush1.xpose.msra.mxu0 0.0
    %289 = vmatprep.subr.mxu0 0.0
    %290 = vmatpush1.xpose.msra.mxu0 0.0
    %291 = vmatprep.subr.mxu0 0.0
    %292 = vmatpush1.xpose.msra.mxu0 0.0
    %293 = vmatprep.subr.mxu0 0.0
    %294 = vmatpush1.xpose.msra.mxu0 0.0
    %295 = vmatprep.subr.mxu0 0.0
    %296 = vmatpush1.xpose.msra.mxu0 0.0
    %297 = vmatprep.subr.mxu0 0.0
    %298 = vmatpush1.xpose.msra.mxu0 0.0
    %299 = vmatprep.subr.mxu0 0.0
    %300 = vmatpush1.xpose.msra.mxu0 0.0
    %301 = vmatprep.subr.mxu0 0.0
    %302 = vmatpush1.xpose.msra.mxu0 0.0
    %303 = vmatprep.subr.mxu0 0.0
    %304 = vmatpush1.xpose.msra.mxu0 0.0
    %305 = vmatprep.subr.mxu0 0.0
    %306 = vmatpush1.xpose.msra.mxu0 0.0
    %307 = vmatprep.subr.mxu0 0.0
    %308 = vmatpush1.xpose.msra.mxu0 0.0
    %309 = vmatprep.subr.mxu0 0.0
    %310 = vmatpush1.xpose.msra.mxu0 0.0
    %311 = vmatprep.subr.mxu0 0.0
    %312 = vmatpush1.xpose.msra.mxu0 0.0
    %313 = vmatprep.subr.mxu0 0.0
    %314 = vmatpush1.xpose.msra.mxu0 0.0
    %315 = vmatprep.subr.mxu0 0.0
    %316 = vmatpush1.xpose.msra.mxu0 0.0
    %317 = vmatprep.subr.mxu0 0.0
    %318 = vmatpush1.xpose.msra.mxu0 0.0
    %319 = vmatprep.subr.mxu0 0.0
    %320 = vmatpush1.xpose.msra.mxu0 0.0
    %321 = vmatprep.subr.mxu0 0.0
    %322 = vmatpush1.xpose.msra.mxu0 0.0
    %323 = vmatprep.subr.mxu0 0.0
    %324 = vmatpush1.xpose.msra.mxu0 0.0
    %325 = vmatprep.mubr.f32.mxu0 0.0
    %326 = vmatmul.mubr.f32.gmra.mrb[0].mxu0 %v257
    %v327 = vpop.f32.mrb[0].mxu0
    %v328 = vadd.f32 0.0, %v327
    %v329 = vpop.f32.mrb[0].mxu0
    %330 = vdwg.mxu0
    %v331 = vsel %vm95, %v328, -1000000.0
    %v332 = vsel %vm166, %v331, -inf
    %333 = vmax.xlane.f32.xlu0 %v332
    %v334 = vpop.xlane.xlu0 %333
    %v335 = vsub.f32 %v331, %v334
    %v336 = vmul.f32 %v335, 1.442695
    %v337 = vpow.pop %v336
    %v338 = vsel %vm166, %v337, 0.0
    %339 = vadd.xlane.f32.xlu0 %v338
    %v340 = vpop.xlane.xlu0 %339
    %v341 = vrcp.pop %v340
    %v342 = vmul.f32 %v337, %v341
    %343 = vrot.lane.b32.xlu0 %v157, 32
    %v344 = vpop.permute.xlu0 %343
    %v347 = vsel %vm166, %v342, 0
    %349 = vmatprep.subr.mxu0 0.0
    %350 = vmatpush1.msra.mxu0 %v344
    %351 = vmatprep.subr.mxu0 0.0
    %352 = vmatpush1.msra.mxu0 0.0
    %353 = vmatprep.subr.mxu0 0.0
    %354 = vmatpush1.msra.mxu0 0.0
    %355 = vmatprep.subr.mxu0 0.0
    %356 = vmatpush1.msra.mxu0 0.0
    %357 = vmatprep.subr.mxu0 0.0
    %358 = vmatpush1.msra.mxu0 0.0
    %359 = vmatprep.subr.mxu0 0.0
    %360 = vmatpush1.msra.mxu0 0.0
    %361 = vmatprep.subr.mxu0 0.0
    %362 = vmatpush1.msra.mxu0 0.0
    %363 = vmatprep.subr.mxu0 0.0
    %364 = vmatpush1.msra.mxu0 0.0
    %365 = vmatprep.subr.mxu0 0.0
    %366 = vmatpush1.msra.mxu0 0.0
    %367 = vmatprep.subr.mxu0 0.0
    %368 = vmatpush1.msra.mxu0 0.0
    %369 = vmatprep.subr.mxu0 0.0
    %370 = vmatpush1.msra.mxu0 0.0
    %371 = vmatprep.subr.mxu0 0.0
    %372 = vmatpush1.msra.mxu0 0.0
    %373 = vmatprep.subr.mxu0 0.0
    %374 = vmatpush1.msra.mxu0 0.0
    %375 = vmatprep.subr.mxu0 0.0
    %376 = vmatpush1.msra.mxu0 0.0
    %377 = vmatprep.subr.mxu0 0.0
    %378 = vmatpush1.msra.mxu0 0.0
    %379 = vmatprep.subr.mxu0 0.0
    %380 = vmatpush1.msra.mxu0 0.0
    %381 = vmatprep.subr.mxu0 0.0
    %382 = vmatpush1.msra.mxu0 0.0
    %383 = vmatprep.subr.mxu0 0.0
    %384 = vmatpush1.msra.mxu0 0.0
    %385 = vmatprep.subr.mxu0 0.0
    %386 = vmatpush1.msra.mxu0 0.0
    %387 = vmatprep.subr.mxu0 0.0
    %388 = vmatpush1.msra.mxu0 0.0
    %389 = vmatprep.subr.mxu0 0.0
    %390 = vmatpush1.msra.mxu0 0.0
    %391 = vmatprep.subr.mxu0 0.0
    %392 = vmatpush1.msra.mxu0 0.0
    %393 = vmatprep.subr.mxu0 0.0
    %394 = vmatpush1.msra.mxu0 0.0
    %395 = vmatprep.subr.mxu0 0.0
    %396 = vmatpush1.msra.mxu0 0.0
    %397 = vmatprep.subr.mxu0 0.0
    %398 = vmatpush1.msra.mxu0 0.0
    %399 = vmatprep.subr.mxu0 0.0
    %400 = vmatpush1.msra.mxu0 0.0
    %401 = vmatprep.subr.mxu0 0.0
    %402 = vmatpush1.msra.mxu0 0.0
    %403 = vmatprep.subr.mxu0 0.0
    %404 = vmatpush1.msra.mxu0 0.0
    %405 = vmatprep.subr.mxu0 0.0
    %406 = vmatpush1.msra.mxu0 0.0
    %407 = vmatprep.subr.mxu0 0.0
    %408 = vmatpush1.msra.mxu0 0.0
    %409 = vmatprep.subr.mxu0 0.0
    %410 = vmatpush1.msra.mxu0 0.0
    %411 = vmatprep.subr.mxu0 0.0
    %412 = vmatpush1.msra.mxu0 0.0
    %413 = vmatprep.mubr.f32.mxu0 0.0
    %414 = vmatmul.mubr.f32.gmra.mrb[0].mxu0 %v347
    %v415 = vpop.f32.mrb[0].mxu0
    %v416 = vadd.f32 0.0, %v415
    %v417 = vpop.f32.mrb[0].mxu0
    %418 = vdwg.mxu0
    %419 = vrot.lane.b32.xlu0 %v157, 64
    %v420 = vpop.permute.xlu0 %419
    %v423 = vsel %vm166, %v252, 0
    %425 = vmatprep.subr.mxu0 0.0
    %426 = vmatpush1.msra.mxu0 %v420
    %427 = vmatprep.subr.mxu0 0.0
    %428 = vmatpush1.msra.mxu0 0.0
    %429 = vmatprep.subr.mxu0 0.0
    %430 = vmatpush1.msra.mxu0 0.0
    %431 = vmatprep.subr.mxu0 0.0
    %432 = vmatpush1.msra.mxu0 0.0
    %433 = vmatprep.subr.mxu0 0.0
    %434 = vmatpush1.msra.mxu0 0.0
    %435 = vmatprep.subr.mxu0 0.0
    %436 = vmatpush1.msra.mxu0 0.0
    %437 = vmatprep.subr.mxu0 0.0
    %438 = vmatpush1.msra.mxu0 0.0
    %439 = vmatprep.subr.mxu0 0.0
    %440 = vmatpush1.msra.mxu0 0.0
    %441 = vmatprep.subr.mxu0 0.0
    %442 = vmatpush1.msra.mxu0 0.0
    %443 = vmatprep.subr.mxu0 0.0
    %444 = vmatpush1.msra.mxu0 0.0
    %445 = vmatprep.subr.mxu0 0.0
    %446 = vmatpush1.msra.mxu0 0.0
    %447 = vmatprep.subr.mxu0 0.0
    %448 = vmatpush1.msra.mxu0 0.0
    %449 = vmatprep.subr.mxu0 0.0
    %450 = vmatpush1.msra.mxu0 0.0
    %451 = vmatprep.subr.mxu0 0.0
    %452 = vmatpush1.msra.mxu0 0.0
    %453 = vmatprep.subr.mxu0 0.0
    %454 = vmatpush1.msra.mxu0 0.0
    %455 = vmatprep.subr.mxu0 0.0
    %456 = vmatpush1.msra.mxu0 0.0
    %457 = vmatprep.subr.mxu0 0.0
    %458 = vmatpush1.msra.mxu0 0.0
    %459 = vmatprep.subr.mxu0 0.0
    %460 = vmatpush1.msra.mxu0 0.0
    %461 = vmatprep.subr.mxu0 0.0
    %462 = vmatpush1.msra.mxu0 0.0
    %463 = vmatprep.subr.mxu0 0.0
    %464 = vmatpush1.msra.mxu0 0.0
    %465 = vmatprep.subr.mxu0 0.0
    %466 = vmatpush1.msra.mxu0 0.0
    %467 = vmatprep.subr.mxu0 0.0
    %468 = vmatpush1.msra.mxu0 0.0
    %469 = vmatprep.subr.mxu0 0.0
    %470 = vmatpush1.msra.mxu0 0.0
    %471 = vmatprep.subr.mxu0 0.0
    %472 = vmatpush1.msra.mxu0 0.0
    %473 = vmatprep.subr.mxu0 0.0
    %474 = vmatpush1.msra.mxu0 0.0
    %475 = vmatprep.subr.mxu0 0.0
    %476 = vmatpush1.msra.mxu0 0.0
    %477 = vmatprep.subr.mxu0 0.0
    %478 = vmatpush1.msra.mxu0 0.0
    %479 = vmatprep.subr.mxu0 0.0
    %480 = vmatpush1.msra.mxu0 0.0
    %481 = vmatprep.subr.mxu0 0.0
    %482 = vmatpush1.msra.mxu0 0.0
    %483 = vmatprep.subr.mxu0 0.0
    %484 = vmatpush1.msra.mxu0 0.0
    %485 = vmatprep.subr.mxu0 0.0
    %486 = vmatpush1.msra.mxu0 0.0
    %487 = vmatprep.subr.mxu0 0.0
    %488 = vmatpush1.msra.mxu0 0.0
    %489 = vmatprep.mubr.f32.mxu0 0.0
    %490 = vmatmul.mubr.f32.gmra.mrb[0].mxu0 %v423
    %v491 = vpop.f32.mrb[0].mxu0
    %v492 = vadd.f32 %v416, %v491
    %v493 = vpop.f32.mrb[0].mxu0
    %494 = vdwg.mxu0
    %495 = vrot.lane.b32.xlu0 %v157, 112
    %v496 = vpop.permute.xlu0 %495
    %497 = vrot.lane.b32.xlu0 %v157, 80
    %v498 = vpop.permute.xlu0 %497
    %v499 = vsel %vm166, %v496, 0
    %v501 = vsel %vm166, %v498, 0
    %503 = vmatprep.subr.mxu0 0.0
    %504 = vmatpush1.xpose.msra.mxu0 %v501
    %505 = vmatprep.subr.mxu0 0.0
    %506 = vmatpush1.xpose.msra.mxu0 0.0
    %507 = vmatprep.subr.mxu0 0.0
    %508 = vmatpush1.xpose.msra.mxu0 0.0
    %509 = vmatprep.subr.mxu0 0.0
    %510 = vmatpush1.xpose.msra.mxu0 0.0
    %511 = vmatprep.subr.mxu0 0.0
    %512 = vmatpush1.xpose.msra.mxu0 0.0
    %513 = vmatprep.subr.mxu0 0.0
    %514 = vmatpush1.xpose.msra.mxu0 0.0
    %515 = vmatprep.subr.mxu0 0.0
    %516 = vmatpush1.xpose.msra.mxu0 0.0
    %517 = vmatprep.subr.mxu0 0.0
    %518 = vmatpush1.xpose.msra.mxu0 0.0
    %519 = vmatprep.subr.mxu0 0.0
    %520 = vmatpush1.xpose.msra.mxu0 0.0
    %521 = vmatprep.subr.mxu0 0.0
    %522 = vmatpush1.xpose.msra.mxu0 0.0
    %523 = vmatprep.subr.mxu0 0.0
    %524 = vmatpush1.xpose.msra.mxu0 0.0
    %525 = vmatprep.subr.mxu0 0.0
    %526 = vmatpush1.xpose.msra.mxu0 0.0
    %527 = vmatprep.subr.mxu0 0.0
    %528 = vmatpush1.xpose.msra.mxu0 0.0
    %529 = vmatprep.subr.mxu0 0.0
    %530 = vmatpush1.xpose.msra.mxu0 0.0
    %531 = vmatprep.subr.mxu0 0.0
    %532 = vmatpush1.xpose.msra.mxu0 0.0
    %533 = vmatprep.subr.mxu0 0.0
    %534 = vmatpush1.xpose.msra.mxu0 0.0
    %535 = vmatprep.subr.mxu0 0.0
    %536 = vmatpush1.xpose.msra.mxu0 0.0
    %537 = vmatprep.subr.mxu0 0.0
    %538 = vmatpush1.xpose.msra.mxu0 0.0
    %539 = vmatprep.subr.mxu0 0.0
    %540 = vmatpush1.xpose.msra.mxu0 0.0
    %541 = vmatprep.subr.mxu0 0.0
    %542 = vmatpush1.xpose.msra.mxu0 0.0
    %543 = vmatprep.subr.mxu0 0.0
    %544 = vmatpush1.xpose.msra.mxu0 0.0
    %545 = vmatprep.subr.mxu0 0.0
    %546 = vmatpush1.xpose.msra.mxu0 0.0
    %547 = vmatprep.subr.mxu0 0.0
    %548 = vmatpush1.xpose.msra.mxu0 0.0
    %549 = vmatprep.subr.mxu0 0.0
    %550 = vmatpush1.xpose.msra.mxu0 0.0
    %551 = vmatprep.subr.mxu0 0.0
    %552 = vmatpush1.xpose.msra.mxu0 0.0
    %553 = vmatprep.subr.mxu0 0.0
    %554 = vmatpush1.xpose.msra.mxu0 0.0
    %555 = vmatprep.subr.mxu0 0.0
    %556 = vmatpush1.xpose.msra.mxu0 0.0
    %557 = vmatprep.subr.mxu0 0.0
    %558 = vmatpush1.xpose.msra.mxu0 0.0
    %559 = vmatprep.subr.mxu0 0.0
    %560 = vmatpush1.xpose.msra.mxu0 0.0
    %561 = vmatprep.subr.mxu0 0.0
    %562 = vmatpush1.xpose.msra.mxu0 0.0
    %563 = vmatprep.subr.mxu0 0.0
    %564 = vmatpush1.xpose.msra.mxu0 0.0
    %565 = vmatprep.subr.mxu0 0.0
    %566 = vmatpush1.xpose.msra.mxu0 0.0
    %567 = vmatprep.mubr.f32.mxu0 0.0
    %568 = vmatmul.mubr.f32.gmra.mrb[0].mxu0 %v499
    %v569 = vpop.f32.mrb[0].mxu0
    %v570 = vadd.f32 0.0, %v569
    %v571 = vpop.f32.mrb[0].mxu0
    %572 = vdwg.mxu0
    %v573 = vsel %vm95, %v570, -1000000.0
    %v574 = vsel %vm166, %v573, -inf
    %575 = vmax.xlane.f32.xlu0 %v574
    %v576 = vpop.xlane.xlu0 %575
    %v577 = vsub.f32 %v573, %v576
    %v578 = vmul.f32 %v577, 1.442695
    %v579 = vpow.pop %v578
    %v580 = vsel %vm166, %v579, 0.0
    %581 = vadd.xlane.f32.xlu0 %v580
    %v582 = vpop.xlane.xlu0 %581
    %v583 = vrcp.pop %v582
    %v584 = vmul.f32 %v579, %v583
    %v586 = vsel %vm166, %v584, 0
    %588 = vmatprep.subr.mxu0 0.0
    %589 = vmatpush1.msra.mxu0 %v159
    %590 = vmatprep.subr.mxu0 0.0
    %591 = vmatpush1.msra.mxu0 0.0
    %592 = vmatprep.subr.mxu0 0.0
    %593 = vmatpush1.msra.mxu0 0.0
    %594 = vmatprep.subr.mxu0 0.0
    %595 = vmatpush1.msra.mxu0 0.0
    %596 = vmatprep.subr.mxu0 0.0
    %597 = vmatpush1.msra.mxu0 0.0
    %598 = vmatprep.subr.mxu0 0.0
    %599 = vmatpush1.msra.mxu0 0.0
    %600 = vmatprep.subr.mxu0 0.0
    %601 = vmatpush1.msra.mxu0 0.0
    %602 = vmatprep.subr.mxu0 0.0
    %603 = vmatpush1.msra.mxu0 0.0
    %604 = vmatprep.subr.mxu0 0.0
    %605 = vmatpush1.msra.mxu0 0.0
    %606 = vmatprep.subr.mxu0 0.0
    %607 = vmatpush1.msra.mxu0 0.0
    %608 = vmatprep.subr.mxu0 0.0
    %609 = vmatpush1.msra.mxu0 0.0
    %610 = vmatprep.subr.mxu0 0.0
    %611 = vmatpush1.msra.mxu0 0.0
    %612 = vmatprep.subr.mxu0 0.0
    %613 = vmatpush1.msra.mxu0 0.0
    %614 = vmatprep.subr.mxu0 0.0
    %615 = vmatpush1.msra.mxu0 0.0
    %616 = vmatprep.subr.mxu0 0.0
    %617 = vmatpush1.msra.mxu0 0.0
    %618 = vmatprep.subr.mxu0 0.0
    %619 = vmatpush1.msra.mxu0 0.0
    %620 = vmatprep.subr.mxu0 0.0
    %621 = vmatpush1.msra.mxu0 0.0
    %622 = vmatprep.subr.mxu0 0.0
    %623 = vmatpush1.msra.mxu0 0.0
    %624 = vmatprep.subr.mxu0 0.0
    %625 = vmatpush1.msra.mxu0 0.0
    %626 = vmatprep.subr.mxu0 0.0
    %627 = vmatpush1.msra.mxu0 0.0
    %628 = vmatprep.subr.mxu0 0.0
    %629 = vmatpush1.msra.mxu0 0.0
    %630 = vmatprep.subr.mxu0 0.0
    %631 = vmatpush1.msra.mxu0 0.0
    %632 = vmatprep.subr.mxu0 0.0
    %633 = vmatpush1.msra.mxu0 0.0
    %634 = vmatprep.subr.mxu0 0.0
    %635 = vmatpush1.msra.mxu0 0.0
    %636 = vmatprep.subr.mxu0 0.0
    %637 = vmatpush1.msra.mxu0 0.0
    %638 = vmatprep.subr.mxu0 0.0
    %639 = vmatpush1.msra.mxu0 0.0
    %640 = vmatprep.subr.mxu0 0.0
    %641 = vmatpush1.msra.mxu0 0.0
    %642 = vmatprep.subr.mxu0 0.0
    %643 = vmatpush1.msra.mxu0 0.0
    %644 = vmatprep.subr.mxu0 0.0
    %645 = vmatpush1.msra.mxu0 0.0
    %646 = vmatprep.subr.mxu0 0.0
    %647 = vmatpush1.msra.mxu0 0.0
    %648 = vmatprep.subr.mxu0 0.0
    %649 = vmatpush1.msra.mxu0 0.0
    %650 = vmatprep.subr.mxu0 0.0
    %651 = vmatpush1.msra.mxu0 0.0
    %652 = vmatprep.mubr.f32.mxu0 0.0
    %653 = vmatmul.mubr.f32.gmra.mrb[0].mxu0 %v586
    %v654 = vpop.f32.mrb[0].mxu0
    %v655 = vadd.f32 0.0, %v654
    %v656 = vpop.f32.mrb[0].mxu0
    %657 = vdwg.mxu0
    %v658 = vadd.f32 %v492, %v655
    %659 = vrot.lane.b32.xlu0 %v157, 104
    %v660 = vpop.permute.xlu0 %659
    %661 = vrot.lane.b32.xlu0 %v157, 72
    %v662 = vpop.permute.xlu0 %661
    %v663 = vsel %vm166, %v660, 0
    %v665 = vsel %vm166, %v662, 0
    %667 = vmatprep.subr.mxu0 0.0
    %668 = vmatpush1.xpose.msra.mxu0 %v665
    %669 = vmatprep.subr.mxu0 0.0
    %670 = vmatpush1.xpose.msra.mxu0 0.0
    %671 = vmatprep.subr.mxu0 0.0
    %672 = vmatpush1.xpose.msra.mxu0 0.0
    %673 = vmatprep.subr.mxu0 0.0
    %674 = vmatpush1.xpose.msra.mxu0 0.0
    %675 = vmatprep.subr.mxu0 0.0
    %676 = vmatpush1.xpose.msra.mxu0 0.0
    %677 = vmatprep.subr.mxu0 0.0
    %678 = vmatpush1.xpose.msra.mxu0 0.0
    %679 = vmatprep.subr.mxu0 0.0
    %680 = vmatpush1.xpose.msra.mxu0 0.0
    %681 = vmatprep.subr.mxu0 0.0
    %682 = vmatpush1.xpose.msra.mxu0 0.0
    %683 = vmatprep.subr.mxu0 0.0
    %684 = vmatpush1.xpose.msra.mxu0 0.0
    %685 = vmatprep.subr.mxu0 0.0
    %686 = vmatpush1.xpose.msra.mxu0 0.0
    %687 = vmatprep.subr.mxu0 0.0
    %688 = vmatpush1.xpose.msra.mxu0 0.0
    %689 = vmatprep.subr.mxu0 0.0
    %690 = vmatpush1.xpose.msra.mxu0 0.0
    %691 = vmatprep.subr.mxu0 0.0
    %692 = vmatpush1.xpose.msra.mxu0 0.0
    %693 = vmatprep.subr.mxu0 0.0
    %694 = vmatpush1.xpose.msra.mxu0 0.0
    %695 = vmatprep.subr.mxu0 0.0
    %696 = vmatpush1.xpose.msra.mxu0 0.0
    %697 = vmatprep.subr.mxu0 0.0
    %698 = vmatpush1.xpose.msra.mxu0 0.0
    %699 = vmatprep.subr.mxu0 0.0
    %700 = vmatpush1.xpose.msra.mxu0 0.0
    %701 = vmatprep.subr.mxu0 0.0
    %702 = vmatpush1.xpose.msra.mxu0 0.0
    %703 = vmatprep.subr.mxu0 0.0
    %704 = vmatpush1.xpose.msra.mxu0 0.0
    %705 = vmatprep.subr.mxu0 0.0
    %706 = vmatpush1.xpose.msra.mxu0 0.0
    %707 = vmatprep.subr.mxu0 0.0
    %708 = vmatpush1.xpose.msra.mxu0 0.0
    %709 = vmatprep.subr.mxu0 0.0
    %710 = vmatpush1.xpose.msra.mxu0 0.0
    %711 = vmatprep.subr.mxu0 0.0
    %712 = vmatpush1.xpose.msra.mxu0 0.0
    %713 = vmatprep.subr.mxu0 0.0
    %714 = vmatpush1.xpose.msra.mxu0 0.0
    %715 = vmatprep.subr.mxu0 0.0
    %716 = vmatpush1.xpose.msra.mxu0 0.0
    %717 = vmatprep.subr.mxu0 0.0
    %718 = vmatpush1.xpose.msra.mxu0 0.0
    %719 = vmatprep.subr.mxu0 0.0
    %720 = vmatpush1.xpose.msra.mxu0 0.0
    %721 = vmatprep.subr.mxu0 0.0
    %722 = vmatpush1.xpose.msra.mxu0 0.0
    %723 = vmatprep.subr.mxu0 0.0
    %724 = vmatpush1.xpose.msra.mxu0 0.0
    %725 = vmatprep.subr.mxu0 0.0
    %726 = vmatpush1.xpose.msra.mxu0 0.0
    %727 = vmatprep.subr.mxu0 0.0
    %728 = vmatpush1.xpose.msra.mxu0 0.0
    %729 = vmatprep.subr.mxu0 0.0
    %730 = vmatpush1.xpose.msra.mxu0 0.0
    %731 = vmatprep.mubr.f32.mxu0 0.0
    %732 = vmatmul.mubr.f32.gmra.mrb[0].mxu0 %v663
    %v733 = vpop.f32.mrb[0].mxu0
    %v734 = vadd.f32 0.0, %v733
    %v735 = vpop.f32.mrb[0].mxu0
    %736 = vdwg.mxu0
    %v737 = vsel %vm95, %v734, -1000000.0
    %v738 = vsel %vm166, %v737, -inf
    %739 = vmax.xlane.f32.xlu0 %v738
    %v740 = vpop.xlane.xlu0 %739
    %v741 = vsub.f32 %v737, %v740
    %v742 = vmul.f32 %v741, 1.442695
    %v743 = vpow.pop %v742
    %v744 = vsel %vm166, %v743, 0.0
    %745 = vadd.xlane.f32.xlu0 %v744
    %v746 = vpop.xlane.xlu0 %745
    %v747 = vrcp.pop %v746
    %v748 = vmul.f32 %v743, %v747
    %750 = vrot.lane.b32.xlu0 %v159, 96
    %v751 = vpop.permute.xlu0 %750
    %v754 = vsel %vm166, %v748, 0
    %756 = vmatprep.subr.mxu0 0.0
    %757 = vmatpush1.msra.mxu0 %v751
    %758 = vmatprep.subr.mxu0 0.0
    %759 = vmatpush1.msra.mxu0 0.0
    %760 = vmatprep.subr.mxu0 0.0
    %761 = vmatpush1.msra.mxu0 0.0
    %762 = vmatprep.subr.mxu0 0.0
    %763 = vmatpush1.msra.mxu0 0.0
    %764 = vmatprep.subr.mxu0 0.0
    %765 = vmatpush1.msra.mxu0 0.0
    %766 = vmatprep.subr.mxu0 0.0
    %767 = vmatpush1.msra.mxu0 0.0
    %768 = vmatprep.subr.mxu0 0.0
    %769 = vmatpush1.msra.mxu0 0.0
    %770 = vmatprep.subr.mxu0 0.0
    %771 = vmatpush1.msra.mxu0 0.0
    %772 = vmatprep.subr.mxu0 0.0
    %773 = vmatpush1.msra.mxu0 0.0
    %774 = vmatprep.subr.mxu0 0.0
    %775 = vmatpush1.msra.mxu0 0.0
    %776 = vmatprep.subr.mxu0 0.0
    %777 = vmatpush1.msra.mxu0 0.0
    %778 = vmatprep.subr.mxu0 0.0
    %779 = vmatpush1.msra.mxu0 0.0
    %780 = vmatprep.subr.mxu0 0.0
    %781 = vmatpush1.msra.mxu0 0.0
    %782 = vmatprep.subr.mxu0 0.0
    %783 = vmatpush1.msra.mxu0 0.0
    %784 = vmatprep.subr.mxu0 0.0
    %785 = vmatpush1.msra.mxu0 0.0
    %786 = vmatprep.subr.mxu0 0.0
    %787 = vmatpush1.msra.mxu0 0.0
    %788 = vmatprep.subr.mxu0 0.0
    %789 = vmatpush1.msra.mxu0 0.0
    %790 = vmatprep.subr.mxu0 0.0
    %791 = vmatpush1.msra.mxu0 0.0
    %792 = vmatprep.subr.mxu0 0.0
    %793 = vmatpush1.msra.mxu0 0.0
    %794 = vmatprep.subr.mxu0 0.0
    %795 = vmatpush1.msra.mxu0 0.0
    %796 = vmatprep.subr.mxu0 0.0
    %797 = vmatpush1.msra.mxu0 0.0
    %798 = vmatprep.subr.mxu0 0.0
    %799 = vmatpush1.msra.mxu0 0.0
    %800 = vmatprep.subr.mxu0 0.0
    %801 = vmatpush1.msra.mxu0 0.0
    %802 = vmatprep.subr.mxu0 0.0
    %803 = vmatpush1.msra.mxu0 0.0
    %804 = vmatprep.subr.mxu0 0.0
    %805 = vmatpush1.msra.mxu0 0.0
    %806 = vmatprep.subr.mxu0 0.0
    %807 = vmatpush1.msra.mxu0 0.0
    %808 = vmatprep.subr.mxu0 0.0
    %809 = vmatpush1.msra.mxu0 0.0
    %810 = vmatprep.subr.mxu0 0.0
    %811 = vmatpush1.msra.mxu0 0.0
    %812 = vmatprep.subr.mxu0 0.0
    %813 = vmatpush1.msra.mxu0 0.0
    %814 = vmatprep.subr.mxu0 0.0
    %815 = vmatpush1.msra.mxu0 0.0
    %816 = vmatprep.subr.mxu0 0.0
    %817 = vmatpush1.msra.mxu0 0.0
    %818 = vmatprep.subr.mxu0 0.0
    %819 = vmatpush1.msra.mxu0 0.0
    %820 = vmatprep.mubr.f32.mxu0 0.0
    %821 = vmatmul.mubr.f32.gmra.mrb[0].mxu0 %v754
    %v822 = vpop.f32.mrb[0].mxu0
    %v823 = vadd.f32 0.0, %v822
    %v824 = vpop.f32.mrb[0].mxu0
    %825 = vdwg.mxu0
    %v826 = vadd.f32 %v658, %v823
    %v827 = vadd.f32 %v826, %v96
    %v828 = vsel %vm118, %v827, 0.0
    %829 = vadd.xlane.f32.xlu0 %v828
    %v830 = vpop.xlane.xlu0 %829
    %v831 = vmul.f32 %v827, %v827
    %v832 = vsel %vm118, %v831, 0.0
    %833 = vadd.xlane.f32.xlu0 %v832
    %v834 = vpop.xlane.xlu0 %833
    %v835 = vrot.slane %v830, 4
    %v836 = vadd.f32 %v830, %v835
    %v837 = vrot.slane %v836, 2
    %v838 = vadd.f32 %v836, %v837
    %v839 = vrot.slane %v838, 1
    %v840 = vadd.f32 %v838, %v839
    %v841 = vmul.f32 %v840, 0.00390625
    %v842 = vrot.slane %v834, 4
    %v843 = vadd.f32 %v834, %v842
    %v844 = vrot.slane %v843, 2
    %v845 = vadd.f32 %v843, %v844
    %v846 = vrot.slane %v845, 1
    %v847 = vadd.f32 %v845, %v846
    %v848 = vmul.f32 %v847, 0.00390625
    %v849 = vmul.f32 %v841, %v841
    %v850 = vsub.f32 %v848, %v849
    %v851 = vmax.f32 %v850, 0.0
    %v852 = vsub.f32 %v827, %v841
    %v853 = vadd.f32 %v851, 1e-05
    %v854 = vrsqrt.pop %v853
    %v855 = vmul.f32 %v852, %v854
    %v856 = vmul.f32 %v855, %v82
    %v857 = vadd.f32 %v856, %v84
    %v858 = vpack.c.bf16 %v857, %v857
    %v863 = vunpack.c.l.b16 %v78
    %v864 = vunpack.c.l.b16 %v79
    %v865 = vunpack.c.l.b16 %v80
    %v866 = vunpack.c.l.b16 %v81
    %v867 = vpack.c.b16 %v864, %v863
    %v868 = vpack.c.b16 %v866, %v865
    %v872 = vsel %vm118, %v858, 0
    %874 = vmatprep.subr.bf16.mxu0 0
    %875 = vmatpush1.bf16.msra.mxu0 %v867
    %876 = vmatprep.subr.bf16.mxu0 0
    %877 = vmatpush1.bf16.msra.mxu0 %v868
    %878 = vmatprep.subr.bf16.mxu0 0
    %879 = vmatpush1.bf16.msra.mxu0 0
    %880 = vmatprep.subr.bf16.mxu0 0
    %881 = vmatpush1.bf16.msra.mxu0 0
    %882 = vmatprep.subr.bf16.mxu0 0
    %883 = vmatpush1.bf16.msra.mxu0 0
    %884 = vmatprep.subr.bf16.mxu0 0
    %885 = vmatpush1.bf16.msra.mxu0 0
    %886 = vmatprep.subr.bf16.mxu0 0
    %887 = vmatpush1.bf16.msra.mxu0 0
    %888 = vmatprep.subr.bf16.mxu0 0
    %889 = vmatpush1.bf16.msra.mxu0 0
    %890 = vmatprep.subr.bf16.mxu0 0
    %891 = vmatpush1.bf16.msra.mxu0 0
    %892 = vmatprep.subr.bf16.mxu0 0
    %893 = vmatpush1.bf16.msra.mxu0 0
    %894 = vmatprep.subr.bf16.mxu0 0
    %895 = vmatpush1.bf16.msra.mxu0 0
    %896 = vmatprep.subr.bf16.mxu0 0
    %897 = vmatpush1.bf16.msra.mxu0 0
    %898 = vmatprep.subr.bf16.mxu0 0
    %899 = vmatpush1.bf16.msra.mxu0 0
    %900 = vmatprep.subr.bf16.mxu0 0
    %901 = vmatpush1.bf16.msra.mxu0 0
    %902 = vmatprep.subr.bf16.mxu0 0
    %903 = vmatpush1.bf16.msra.mxu0 0
    %904 = vmatprep.subr.bf16.mxu0 0
    %905 = vmatpush1.bf16.msra.mxu0 0
    %906 = vmatprep.mubr.bf16.mxu0 0
    %907 = vmatmul.mubr.bf16.gmra.mrb[0].mxu0 %v872
    %v908 = vpop.f32.mrb[0].mxu0
    %v909 = vadd.f32 %v90, %v908
    %v910 = vpop.f32.mrb[0].mxu0
    %v911 = vpop.f32.mrb[0].mxu0
    %v912 = vpop.f32.mrb[0].mxu0
    %913 = vdwg.mxu0
    %v914 = vadd.f32 %v909, %v857
    %v915 = vsel %vm118, %v914, 0.0
    %916 = vadd.xlane.f32.xlu0 %v915
    %v917 = vpop.xlane.xlu0 %916
    %v918 = vmul.f32 %v914, %v914
    %v919 = vsel %vm118, %v918, 0.0
    %920 = vadd.xlane.f32.xlu0 %v919
    %v921 = vpop.xlane.xlu0 %920
    %v922 = vrot.slane %v917, 4
    %v923 = vadd.f32 %v917, %v922
    %v924 = vrot.slane %v923, 2
    %v925 = vadd.f32 %v923, %v924
    %v926 = vrot.slane %v925, 1
    %v927 = vadd.f32 %v925, %v926
    %v928 = vmul.f32 %v927, 0.00390625
    %v929 = vrot.slane %v921, 4
    %v930 = vadd.f32 %v921, %v929
    %v931 = vrot.slane %v930, 2
    %v932 = vadd.f32 %v930, %v931
    %v933 = vrot.slane %v932, 1
    %v934 = vadd.f32 %v932, %v933
    %v935 = vmul.f32 %v934, 0.00390625
    %v936 = vmul.f32 %v928, %v928
    %v937 = vsub.f32 %v935, %v936
    %v938 = vmax.f32 %v937, 0.0
    %v939 = vsub.f32 %v914, %v928
    %v940 = vadd.f32 %v938, 1e-05
    %v941 = vrsqrt.pop %v940
    %v942 = vmul.f32 %v939, %v941
    %v943 = vmul.f32 %v942, %v86
    %v944 = vadd.f32 %v943, %v88
    %945 = vst.msk [vmem:[#allocation10] sm:$0xff] %vm118, %v944
    %s946 = scalar_lea.vmem [#allocation2], 8
    %v947 = vld [vmem:[%s946] sm:$0xff]
    %v948 = vpack.c.bf16 %v947, %v947
    %v950 = vsel %vm118, %v948, 0
    %952 = vmatprep.subr.bf16.mxu0 %v111
    %953 = vmatpush1.bf16.msra.mxu0 %v110
    %954 = vmatprep.subr.bf16.mxu0 %v113
    %955 = vmatpush1.bf16.msra.mxu0 %v112
    %956 = vmatprep.subr.bf16.mxu0 0
    %957 = vmatpush1.bf16.msra.mxu0 0
    %958 = vmatprep.subr.bf16.mxu0 0
    %959 = vmatpush1.bf16.msra.mxu0 0
    %960 = vmatprep.subr.bf16.mxu0 0
    %961 = vmatpush1.bf16.msra.mxu0 0
    %962 = vmatprep.subr.bf16.mxu0 0
    %963 = vmatpush1.bf16.msra.mxu0 0
    %964 = vmatprep.subr.bf16.mxu0 0
    %965 = vmatpush1.bf16.msra.mxu0 0
    %966 = vmatprep.subr.bf16.mxu0 0
    %967 = vmatpush1.bf16.msra.mxu0 0
    %968 = vmatprep.subr.bf16.mxu0 0
    %969 = vmatpush1.bf16.msra.mxu0 0
    %970 = vmatprep.subr.bf16.mxu0 0
    %971 = vmatpush1.bf16.msra.mxu0 0
    %972 = vmatprep.subr.bf16.mxu0 0
    %973 = vmatpush1.bf16.msra.mxu0 0
    %974 = vmatprep.subr.bf16.mxu0 0
    %975 = vmatpush1.bf16.msra.mxu0 0
    %976 = vmatprep.subr.bf16.mxu0 0
    %977 = vmatpush1.bf16.msra.mxu0 0
    %978 = vmatprep.subr.bf16.mxu0 0
    %979 = vmatpush1.bf16.msra.mxu0 0
    %980 = vmatprep.subr.bf16.mxu0 0
    %981 = vmatpush1.bf16.msra.mxu0 0
    %982 = vmatprep.subr.bf16.mxu0 0
    %983 = vmatpush1.bf16.msra.mxu0 0
    %984 = vmatprep.mubr.bf16.mxu0 0
    %985 = vmatmul.mubr.bf16.gmra.mrb[0].mxu0 %v950
    %v986 = vpop.f32.mrb[0].mxu0
    %v987 = vadd.f32 0.0, %v986
    %v988 = vpop.f32.mrb[0].mxu0
    %v989 = vadd.f32 0.0, %v988
    %v990 = vpop.f32.mrb[0].mxu0
    %v991 = vpop.f32.mrb[0].mxu0
    %992 = vdwg.mxu0
    %994 = vrot.lane.b32.xlu0 %v987, 96
    %v995 = vpop.permute.xlu0 %994
    %v996 = vsel %vm166, %v987, 0
    %v998 = vsel %vm166, %v995, 0
    %1000 = vmatprep.subr.mxu0 0.0
    %1001 = vmatpush1.xpose.msra.mxu0 %v998
    %1002 = vmatprep.subr.mxu0 0.0
    %1003 = vmatpush1.xpose.msra.mxu0 0.0
    %1004 = vmatprep.subr.mxu0 0.0
    %1005 = vmatpush1.xpose.msra.mxu0 0.0
    %1006 = vmatprep.subr.mxu0 0.0
    %1007 = vmatpush1.xpose.msra.mxu0 0.0
    %1008 = vmatprep.subr.mxu0 0.0
    %1009 = vmatpush1.xpose.msra.mxu0 0.0
    %1010 = vmatprep.subr.mxu0 0.0
    %1011 = vmatpush1.xpose.msra.mxu0 0.0
    %1012 = vmatprep.subr.mxu0 0.0
    %1013 = vmatpush1.xpose.msra.mxu0 0.0
    %1014 = vmatprep.subr.mxu0 0.0
    %1015 = vmatpush1.xpose.msra.mxu0 0.0
    %1016 = vmatprep.subr.mxu0 0.0
    %1017 = vmatpush1.xpose.msra.mxu0 0.0
    %1018 = vmatprep.subr.mxu0 0.0
    %1019 = vmatpush1.xpose.msra.mxu0 0.0
    %1020 = vmatprep.subr.mxu0 0.0
    %1021 = vmatpush1.xpose.msra.mxu0 0.0
    %1022 = vmatprep.subr.mxu0 0.0
    %1023 = vmatpush1.xpose.msra.mxu0 0.0
    %1024 = vmatprep.subr.mxu0 0.0
    %1025 = vmatpush1.xpose.msra.mxu0 0.0
    %1026 = vmatprep.subr.mxu0 0.0
    %1027 = vmatpush1.xpose.msra.mxu0 0.0
    %1028 = vmatprep.subr.mxu0 0.0
    %1029 = vmatpush1.xpose.msra.mxu0 0.0
    %1030 = vmatprep.subr.mxu0 0.0
    %1031 = vmatpush1.xpose.msra.mxu0 0.0
    %1032 = vmatprep.subr.mxu0 0.0
    %1033 = vmatpush1.xpose.msra.mxu0 0.0
    %1034 = vmatprep.subr.mxu0 0.0
    %1035 = vmatpush1.xpose.msra.mxu0 0.0
    %1036 = vmatprep.subr.mxu0 0.0
    %1037 = vmatpush1.xpose.msra.mxu0 0.0
    %1038 = vmatprep.subr.mxu0 0.0
    %1039 = vmatpush1.xpose.msra.mxu0 0.0
    %1040 = vmatprep.subr.mxu0 0.0
    %1041 = vmatpush1.xpose.msra.mxu0 0.0
    %1042 = vmatprep.subr.mxu0 0.0
    %1043 = vmatpush1.xpose.msra.mxu0 0.0
    %1044 = vmatprep.subr.mxu0 0.0
    %1045 = vmatpush1.xpose.msra.mxu0 0.0
    %1046 = vmatprep.subr.mxu0 0.0
    %1047 = vmatpush1.xpose.msra.mxu0 0.0
    %1048 = vmatprep.subr.mxu0 0.0
    %1049 = vmatpush1.xpose.msra.mxu0 0.0
    %1050 = vmatprep.subr.mxu0 0.0
    %1051 = vmatpush1.xpose.msra.mxu0 0.0
    %1052 = vmatprep.subr.mxu0 0.0
    %1053 = vmatpush1.xpose.msra.mxu0 0.0
    %1054 = vmatprep.subr.mxu0 0.0
    %1055 = vmatpush1.xpose.msra.mxu0 0.0
    %1056 = vmatprep.subr.mxu0 0.0
    %1057 = vmatpush1.xpose.msra.mxu0 0.0
    %1058 = vmatprep.subr.mxu0 0.0
    %1059 = vmatpush1.xpose.msra.mxu0 0.0
    %1060 = vmatprep.subr.mxu0 0.0
    %1061 = vmatpush1.xpose.msra.mxu0 0.0
    %1062 = vmatprep.subr.mxu0 0.0
    %1063 = vmatpush1.xpose.msra.mxu0 0.0
    %1064 = vmatprep.mubr.f32.mxu0 0.0
    %1065 = vmatmul.mubr.f32.gmra.mrb[0].mxu0 %v996
    %v1066 = vpop.f32.mrb[0].mxu0
    %v1067 = vadd.f32 0.0, %v1066
    %v1068 = vpop.f32.mrb[0].mxu0
    %1069 = vdwg.mxu0
    %v1070 = vsel %vm95, %v1067, -1000000.0
    %v1071 = vsel %vm166, %v1070, -inf
    %1072 = vmax.xlane.f32.xlu0 %v1071
    %v1073 = vpop.xlane.xlu0 %1072
    %v1074 = vsub.f32 %v1070, %v1073
    %v1075 = vmul.f32 %v1074, 1.442695
    %v1076 = vpow.pop %v1075
    %v1077 = vsel %vm166, %v1076, 0.0
    %1078 = vadd.xlane.f32.xlu0 %v1077
    %v1079 = vpop.xlane.xlu0 %1078
    %v1080 = vrcp.pop %v1079
    %v1081 = vmul.f32 %v1076, %v1080
    %1082 = vrot.lane.b32.xlu0 %v987, 120
    %v1083 = vpop.permute.xlu0 %1082
    %1084 = vrot.lane.b32.xlu0 %v987, 88
    %v1085 = vpop.permute.xlu0 %1084
    %v1086 = vsel %vm166, %v1083, 0
    %v1088 = vsel %vm166, %v1085, 0
    %1090 = vmatprep.subr.mxu0 0.0
    %1091 = vmatpush1.xpose.msra.mxu0 %v1088
    %1092 = vmatprep.subr.mxu0 0.0
    %1093 = vmatpush1.xpose.msra.mxu0 0.0
    %1094 = vmatprep.subr.mxu0 0.0
    %1095 = vmatpush1.xpose.msra.mxu0 0.0
    %1096 = vmatprep.subr.mxu0 0.0
    %1097 = vmatpush1.xpose.msra.mxu0 0.0
    %1098 = vmatprep.subr.mxu0 0.0
    %1099 = vmatpush1.xpose.msra.mxu0 0.0
    %1100 = vmatprep.subr.mxu0 0.0
    %1101 = vmatpush1.xpose.msra.mxu0 0.0
    %1102 = vmatprep.subr.mxu0 0.0
    %1103 = vmatpush1.xpose.msra.mxu0 0.0
    %1104 = vmatprep.subr.mxu0 0.0
    %1105 = vmatpush1.xpose.msra.mxu0 0.0
    %1106 = vmatprep.subr.mxu0 0.0
    %1107 = vmatpush1.xpose.msra.mxu0 0.0
    %1108 = vmatprep.subr.mxu0 0.0
    %1109 = vmatpush1.xpose.msra.mxu0 0.0
    %1110 = vmatprep.subr.mxu0 0.0
    %1111 = vmatpush1.xpose.msra.mxu0 0.0
    %1112 = vmatprep.subr.mxu0 0.0
    %1113 = vmatpush1.xpose.msra.mxu0 0.0
    %1114 = vmatprep.subr.mxu0 0.0
    %1115 = vmatpush1.xpose.msra.mxu0 0.0
    %1116 = vmatprep.subr.mxu0 0.0
    %1117 = vmatpush1.xpose.msra.mxu0 0.0
    %1118 = vmatprep.subr.mxu0 0.0
    %1119 = vmatpush1.xpose.msra.mxu0 0.0
    %1120 = vmatprep.subr.mxu0 0.0
    %1121 = vmatpush1.xpose.msra.mxu0 0.0
    %1122 = vmatprep.subr.mxu0 0.0
    %1123 = vmatpush1.xpose.msra.mxu0 0.0
    %1124 = vmatprep.subr.mxu0 0.0
    %1125 = vmatpush1.xpose.msra.mxu0 0.0
    %1126 = vmatprep.subr.mxu0 0.0
    %1127 = vmatpush1.xpose.msra.mxu0 0.0
    %1128 = vmatprep.subr.mxu0 0.0
    %1129 = vmatpush1.xpose.msra.mxu0 0.0
    %1130 = vmatprep.subr.mxu0 0.0
    %1131 = vmatpush1.xpose.msra.mxu0 0.0
    %1132 = vmatprep.subr.mxu0 0.0
    %1133 = vmatpush1.xpose.msra.mxu0 0.0
    %1134 = vmatprep.subr.mxu0 0.0
    %1135 = vmatpush1.xpose.msra.mxu0 0.0
    %1136 = vmatprep.subr.mxu0 0.0
    %1137 = vmatpush1.xpose.msra.mxu0 0.0
    %1138 = vmatprep.subr.mxu0 0.0
    %1139 = vmatpush1.xpose.msra.mxu0 0.0
    %1140 = vmatprep.subr.mxu0 0.0
    %1141 = vmatpush1.xpose.msra.mxu0 0.0
    %1142 = vmatprep.subr.mxu0 0.0
    %1143 = vmatpush1.xpose.msra.mxu0 0.0
    %1144 = vmatprep.subr.mxu0 0.0
    %1145 = vmatpush1.xpose.msra.mxu0 0.0
    %1146 = vmatprep.subr.mxu0 0.0
    %1147 = vmatpush1.xpose.msra.mxu0 0.0
    %1148 = vmatprep.subr.mxu0 0.0
    %1149 = vmatpush1.xpose.msra.mxu0 0.0
    %1150 = vmatprep.subr.mxu0 0.0
    %1151 = vmatpush1.xpose.msra.mxu0 0.0
    %1152 = vmatprep.subr.mxu0 0.0
    %1153 = vmatpush1.xpose.msra.mxu0 0.0
    %1154 = vmatprep.mubr.f32.mxu0 0.0
    %1155 = vmatmul.mubr.f32.gmra.mrb[0].mxu0 %v1086
    %v1156 = vpop.f32.mrb[0].mxu0
    %v1157 = vadd.f32 0.0, %v1156
    %v1158 = vpop.f32.mrb[0].mxu0
    %1159 = vdwg.mxu0
    %v1160 = vsel %vm95, %v1157, -1000000.0
    %v1161 = vsel %vm166, %v1160, -inf
    %1162 = vmax.xlane.f32.xlu0 %v1161
    %v1163 = vpop.xlane.xlu0 %1162
    %v1164 = vsub.f32 %v1160, %v1163
    %v1165 = vmul.f32 %v1164, 1.442695
    %v1166 = vpow.pop %v1165
    %v1167 = vsel %vm166, %v1166, 0.0
    %1168 = vadd.xlane.f32.xlu0 %v1167
    %v1169 = vpop.xlane.xlu0 %1168
    %v1170 = vrcp.pop %v1169
    %v1171 = vmul.f32 %v1166, %v1170
    %1172 = vrot.lane.b32.xlu0 %v987, 32
    %v1173 = vpop.permute.xlu0 %1172
    %v1176 = vsel %vm166, %v1171, 0
    %1178 = vmatprep.subr.mxu0 0.0
    %1179 = vmatpush1.msra.mxu0 %v1173
    %1180 = vmatprep.subr.mxu0 0.0
    %1181 = vmatpush1.msra.mxu0 0.0
    %1182 = vmatprep.subr.mxu0 0.0
    %1183 = vmatpush1.msra.mxu0 0.0
    %1184 = vmatprep.subr.mxu0 0.0
    %1185 = vmatpush1.msra.mxu0 0.0
    %1186 = vmatprep.subr.mxu0 0.0
    %1187 = vmatpush1.msra.mxu0 0.0
    %1188 = vmatprep.subr.mxu0 0.0
    %1189 = vmatpush1.msra.mxu0 0.0
    %1190 = vmatprep.subr.mxu0 0.0
    %1191 = vmatpush1.msra.mxu0 0.0
    %1192 = vmatprep.subr.mxu0 0.0
    %1193 = vmatpush1.msra.mxu0 0.0
    %1194 = vmatprep.subr.mxu0 0.0
    %1195 = vmatpush1.msra.mxu0 0.0
    %1196 = vmatprep.subr.mxu0 0.0
    %1197 = vmatpush1.msra.mxu0 0.0
    %1198 = vmatprep.subr.mxu0 0.0
    %1199 = vmatpush1.msra.mxu0 0.0
    %1200 = vmatprep.subr.mxu0 0.0
    %1201 = vmatpush1.msra.mxu0 0.0
    %1202 = vmatprep.subr.mxu0 0.0
    %1203 = vmatpush1.msra.mxu0 0.0
    %1204 = vmatprep.subr.mxu0 0.0
    %1205 = vmatpush1.msra.mxu0 0.0
    %1206 = vmatprep.subr.mxu0 0.0
    %1207 = vmatpush1.msra.mxu0 0.0
    %1208 = vmatprep.subr.mxu0 0.0
    %1209 = vmatpush1.msra.mxu0 0.0
    %1210 = vmatprep.subr.mxu0 0.0
    %1211 = vmatpush1.msra.mxu0 0.0
    %1212 = vmatprep.subr.mxu0 0.0
    %1213 = vmatpush1.msra.mxu0 0.0
    %1214 = vmatprep.subr.mxu0 0.0
    %1215 = vmatpush1.msra.mxu0 0.0
    %1216 = vmatprep.subr.mxu0 0.0
    %1217 = vmatpush1.msra.mxu0 0.0
    %1218 = vmatprep.subr.mxu0 0.0
    %1219 = vmatpush1.msra.mxu0 0.0
    %1220 = vmatprep.subr.mxu0 0.0
    %1221 = vmatpush1.msra.mxu0 0.0
    %1222 = vmatprep.subr.mxu0 0.0
    %1223 = vmatpush1.msra.mxu0 0.0
    %1224 = vmatprep.subr.mxu0 0.0
    %1225 = vmatpush1.msra.mxu0 0.0
    %1226 = vmatprep.subr.mxu0 0.0
    %1227 = vmatpush1.msra.mxu0 0.0
    %1228 = vmatprep.subr.mxu0 0.0
    %1229 = vmatpush1.msra.mxu0 0.0
    %1230 = vmatprep.subr.mxu0 0.0
    %1231 = vmatpush1.msra.mxu0 0.0
    %1232 = vmatprep.subr.mxu0 0.0
    %1233 = vmatpush1.msra.mxu0 0.0
    %1234 = vmatprep.subr.mxu0 0.0
    %1235 = vmatpush1.msra.mxu0 0.0
    %1236 = vmatprep.subr.mxu0 0.0
    %1237 = vmatpush1.msra.mxu0 0.0
    %1238 = vmatprep.subr.mxu0 0.0
    %1239 = vmatpush1.msra.mxu0 0.0
    %1240 = vmatprep.subr.mxu0 0.0
    %1241 = vmatpush1.msra.mxu0 0.0
    %1242 = vmatprep.mubr.f32.mxu0 0.0
    %1243 = vmatmul.mubr.f32.gmra.mrb[0].mxu0 %v1176
    %v1244 = vpop.f32.mrb[0].mxu0
    %v1245 = vadd.f32 0.0, %v1244
    %v1246 = vpop.f32.mrb[0].mxu0
    %1247 = vdwg.mxu0
    %1248 = vrot.lane.b32.xlu0 %v987, 64
    %v1249 = vpop.permute.xlu0 %1248
    %v1252 = vsel %vm166, %v1081, 0
    %1254 = vmatprep.subr.mxu0 0.0
    %1255 = vmatpush1.msra.mxu0 %v1249
    %1256 = vmatprep.subr.mxu0 0.0
    %1257 = vmatpush1.msra.mxu0 0.0
    %1258 = vmatprep.subr.mxu0 0.0
    %1259 = vmatpush1.msra.mxu0 0.0
    %1260 = vmatprep.subr.mxu0 0.0
    %1261 = vmatpush1.msra.mxu0 0.0
    %1262 = vmatprep.subr.mxu0 0.0
    %1263 = vmatpush1.msra.mxu0 0.0
    %1264 = vmatprep.subr.mxu0 0.0
    %1265 = vmatpush1.msra.mxu0 0.0
    %1266 = vmatprep.subr.mxu0 0.0
    %1267 = vmatpush1.msra.mxu0 0.0
    %1268 = vmatprep.subr.mxu0 0.0
    %1269 = vmatpush1.msra.mxu0 0.0
    %1270 = vmatprep.subr.mxu0 0.0
    %1271 = vmatpush1.msra.mxu0 0.0
    %1272 = vmatprep.subr.mxu0 0.0
    %1273 = vmatpush1.msra.mxu0 0.0
    %1274 = vmatprep.subr.mxu0 0.0
    %1275 = vmatpush1.msra.mxu0 0.0
    %1276 = vmatprep.subr.mxu0 0.0
    %1277 = vmatpush1.msra.mxu0 0.0
    %1278 = vmatprep.subr.mxu0 0.0
    %1279 = vmatpush1.msra.mxu0 0.0
    %1280 = vmatprep.subr.mxu0 0.0
    %1281 = vmatpush1.msra.mxu0 0.0
    %1282 = vmatprep.subr.mxu0 0.0
    %1283 = vmatpush1.msra.mxu0 0.0
    %1284 = vmatprep.subr.mxu0 0.0
    %1285 = vmatpush1.msra.mxu0 0.0
    %1286 = vmatprep.subr.mxu0 0.0
    %1287 = vmatpush1.msra.mxu0 0.0
    %1288 = vmatprep.subr.mxu0 0.0
    %1289 = vmatpush1.msra.mxu0 0.0
    %1290 = vmatprep.subr.mxu0 0.0
    %1291 = vmatpush1.msra.mxu0 0.0
    %1292 = vmatprep.subr.mxu0 0.0
    %1293 = vmatpush1.msra.mxu0 0.0
    %1294 = vmatprep.subr.mxu0 0.0
    %1295 = vmatpush1.msra.mxu0 0.0
    %1296 = vmatprep.subr.mxu0 0.0
    %1297 = vmatpush1.msra.mxu0 0.0
    %1298 = vmatprep.subr.mxu0 0.0
    %1299 = vmatpush1.msra.mxu0 0.0
    %1300 = vmatprep.subr.mxu0 0.0
    %1301 = vmatpush1.msra.mxu0 0.0
    %1302 = vmatprep.subr.mxu0 0.0
    %1303 = vmatpush1.msra.mxu0 0.0
    %1304 = vmatprep.subr.mxu0 0.0
    %1305 = vmatpush1.msra.mxu0 0.0
    %1306 = vmatprep.subr.mxu0 0.0
    %1307 = vmatpush1.msra.mxu0 0.0
    %1308 = vmatprep.subr.mxu0 0.0
    %1309 = vmatpush1.msra.mxu0 0.0
    %1310 = vmatprep.subr.mxu0 0.0
    %1311 = vmatpush1.msra.mxu0 0.0
    %1312 = vmatprep.subr.mxu0 0.0
    %1313 = vmatpush1.msra.mxu0 0.0
    %1314 = vmatprep.subr.mxu0 0.0
    %1315 = vmatpush1.msra.mxu0 0.0
    %1316 = vmatprep.subr.mxu0 0.0
    %1317 = vmatpush1.msra.mxu0 0.0
    %1318 = vmatprep.mubr.f32.mxu0 0.0
    %1319 = vmatmul.mubr.f32.gmra.mrb[0].mxu0 %v1252
    %v1320 = vpop.f32.mrb[0].mxu0
    %v1321 = vadd.f32 %v1245, %v1320
    %v1322 = vpop.f32.mrb[0].mxu0
    %1323 = vdwg.mxu0
    %1324 = vrot.lane.b32.xlu0 %v987, 112
    %v1325 = vpop.permute.xlu0 %1324
    %1326 = vrot.lane.b32.xlu0 %v987, 80
    %v1327 = vpop.permute.xlu0 %1326
    %v1328 = vsel %vm166, %v1325, 0
    %v1330 = vsel %vm166, %v1327, 0
    %1332 = vmatprep.subr.mxu0 0.0
    %1333 = vmatpush1.xpose.msra.mxu0 %v1330
    %1334 = vmatprep.subr.mxu0 0.0
    %1335 = vmatpush1.xpose.msra.mxu0 0.0
    %1336 = vmatprep.subr.mxu0 0.0
    %1337 = vmatpush1.xpose.msra.mxu0 0.0
    %1338 = vmatprep.subr.mxu0 0.0
    %1339 = vmatpush1.xpose.msra.mxu0 0.0
    %1340 = vmatprep.subr.mxu0 0.0
    %1341 = vmatpush1.xpose.msra.mxu0 0.0
    %1342 = vmatprep.subr.mxu0 0.0
    %1343 = vmatpush1.xpose.msra.mxu0 0.0
    %1344 = vmatprep.subr.mxu0 0.0
    %1345 = vmatpush1.xpose.msra.mxu0 0.0
    %1346 = vmatprep.subr.mxu0 0.0
    %1347 = vmatpush1.xpose.msra.mxu0 0.0
    %1348 = vmatprep.subr.mxu0 0.0
    %1349 = vmatpush1.xpose.msra.mxu0 0.0
    %1350 = vmatprep.subr.mxu0 0.0
    %1351 = vmatpush1.xpose.msra.mxu0 0.0
    %1352 = vmatprep.subr.mxu0 0.0
    %1353 = vmatpush1.xpose.msra.mxu0 0.0
    %1354 = vmatprep.subr.mxu0 0.0
    %1355 = vmatpush1.xpose.msra.mxu0 0.0
    %1356 = vmatprep.subr.mxu0 0.0
    %1357 = vmatpush1.xpose.msra.mxu0 0.0
    %1358 = vmatprep.subr.mxu0 0.0
    %1359 = vmatpush1.xpose.msra.mxu0 0.0
    %1360 = vmatprep.subr.mxu0 0.0
    %1361 = vmatpush1.xpose.msra.mxu0 0.0
    %1362 = vmatprep.subr.mxu0 0.0
    %1363 = vmatpush1.xpose.msra.mxu0 0.0
    %1364 = vmatprep.subr.mxu0 0.0
    %1365 = vmatpush1.xpose.msra.mxu0 0.0
    %1366 = vmatprep.subr.mxu0 0.0
    %1367 = vmatpush1.xpose.msra.mxu0 0.0
    %1368 = vmatprep.subr.mxu0 0.0
    %1369 = vmatpush1.xpose.msra.mxu0 0.0
    %1370 = vmatprep.subr.mxu0 0.0
    %1371 = vmatpush1.xpose.msra.mxu0 0.0
    %1372 = vmatprep.subr.mxu0 0.0
    %1373 = vmatpush1.xpose.msra.mxu0 0.0
    %1374 = vmatprep.subr.mxu0 0.0
    %1375 = vmatpush1.xpose.msra.mxu0 0.0
    %1376 = vmatprep.subr.mxu0 0.0
    %1377 = vmatpush1.xpose.msra.mxu0 0.0
    %1378 = vmatprep.subr.mxu0 0.0
    %1379 = vmatpush1.xpose.msra.mxu0 0.0
    %1380 = vmatprep.subr.mxu0 0.0
    %1381 = vmatpush1.xpose.msra.mxu0 0.0
    %1382 = vmatprep.subr.mxu0 0.0
    %1383 = vmatpush1.xpose.msra.mxu0 0.0
    %1384 = vmatprep.subr.mxu0 0.0
    %1385 = vmatpush1.xpose.msra.mxu0 0.0
    %1386 = vmatprep.subr.mxu0 0.0
    %1387 = vmatpush1.xpose.msra.mxu0 0.0
    %1388 = vmatprep.subr.mxu0 0.0
    %1389 = vmatpush1.xpose.msra.mxu0 0.0
    %1390 = vmatprep.subr.mxu0 0.0
    %1391 = vmatpush1.xpose.msra.mxu0 0.0
    %1392 = vmatprep.subr.mxu0 0.0
    %1393 = vmatpush1.xpose.msra.mxu0 0.0
    %1394 = vmatprep.subr.mxu0 0.0
    %1395 = vmatpush1.xpose.msra.mxu0 0.0
    %1396 = vmatprep.mubr.f32.mxu0 0.0
    %1397 = vmatmul.mubr.f32.gmra.mrb[0].mxu0 %v1328
    %v1398 = vpop.f32.mrb[0].mxu0
    %v1399 = vadd.f32 0.0, %v1398
    %v1400 = vpop.f32.mrb[0].mxu0
    %1401 = vdwg.mxu0
    %v1402 = vsel %vm95, %v1399, -1000000.0
    %v1403 = vsel %vm166, %v1402, -inf
    %1404 = vmax.xlane.f32.xlu0 %v1403
    %v1405 = vpop.xlane.xlu0 %1404
    %v1406 = vsub.f32 %v1402, %v1405
    %v1407 = vmul.f32 %v1406, 1.442695
    %v1408 = vpow.pop %v1407
    %v1409 = vsel %vm166, %v1408, 0.0
    %1410 = vadd.xlane.f32.xlu0 %v1409
    %v1411 = vpop.xlane.xlu0 %1410
    %v1412 = vrcp.pop %v1411
    %v1413 = vmul.f32 %v1408, %v1412
    %v1415 = vsel %vm166, %v1413, 0
    %1417 = vmatprep.subr.mxu0 0.0
    %1418 = vmatpush1.msra.mxu0 %v989
    %1419 = vmatprep.subr.mxu0 0.0
    %1420 = vmatpush1.msra.mxu0 0.0
    %1421 = vmatprep.subr.mxu0 0.0
    %1422 = vmatpush1.msra.mxu0 0.0
    %1423 = vmatprep.subr.mxu0 0.0
    %1424 = vmatpush1.msra.mxu0 0.0
    %1425 = vmatprep.subr.mxu0 0.0
    %1426 = vmatpush1.msra.mxu0 0.0
    %1427 = vmatprep.subr.mxu0 0.0
    %1428 = vmatpush1.msra.mxu0 0.0
    %1429 = vmatprep.subr.mxu0 0.0
    %1430 = vmatpush1.msra.mxu0 0.0
    %1431 = vmatprep.subr.mxu0 0.0
    %1432 = vmatpush1.msra.mxu0 0.0
    %1433 = vmatprep.subr.mxu0 0.0
    %1434 = vmatpush1.msra.mxu0 0.0
    %1435 = vmatprep.subr.mxu0 0.0
    %1436 = vmatpush1.msra.mxu0 0.0
    %1437 = vmatprep.subr.mxu0 0.0
    %1438 = vmatpush1.msra.mxu0 0.0
    %1439 = vmatprep.subr.mxu0 0.0
    %1440 = vmatpush1.msra.mxu0 0.0
    %1441 = vmatprep.subr.mxu0 0.0
    %1442 = vmatpush1.msra.mxu0 0.0
    %1443 = vmatprep.subr.mxu0 0.0
    %1444 = vmatpush1.msra.mxu0 0.0
    %1445 = vmatprep.subr.mxu0 0.0
    %1446 = vmatpush1.msra.mxu0 0.0
    %1447 = vmatprep.subr.mxu0 0.0
    %1448 = vmatpush1.msra.mxu0 0.0
    %1449 = vmatprep.subr.mxu0 0.0
    %1450 = vmatpush1.msra.mxu0 0.0
    %1451 = vmatprep.subr.mxu0 0.0
    %1452 = vmatpush1.msra.mxu0 0.0
    %1453 = vmatprep.subr.mxu0 0.0
    %1454 = vmatpush1.msra.mxu0 0.0
    %1455 = vmatprep.subr.mxu0 0.0
    %1456 = vmatpush1.msra.mxu0 0.0
    %1457 = vmatprep.subr.mxu0 0.0
    %1458 = vmatpush1.msra.mxu0 0.0
    %1459 = vmatprep.subr.mxu0 0.0
    %1460 = vmatpush1.msra.mxu0 0.0
    %1461 = vmatprep.subr.mxu0 0.0
    %1462 = vmatpush1.msra.mxu0 0.0
    %1463 = vmatprep.subr.mxu0 0.0
    %1464 = vmatpush1.msra.mxu0 0.0
    %1465 = vmatprep.subr.mxu0 0.0
    %1466 = vmatpush1.msra.mxu0 0.0
    %1467 = vmatprep.subr.mxu0 0.0
    %1468 = vmatpush1.msra.mxu0 0.0
    %1469 = vmatprep.subr.mxu0 0.0
    %1470 = vmatpush1.msra.mxu0 0.0
    %1471 = vmatprep.subr.mxu0 0.0
    %1472 = vmatpush1.msra.mxu0 0.0
    %1473 = vmatprep.subr.mxu0 0.0
    %1474 = vmatpush1.msra.mxu0 0.0
    %1475 = vmatprep.subr.mxu0 0.0
    %1476 = vmatpush1.msra.mxu0 0.0
    %1477 = vmatprep.subr.mxu0 0.0
    %1478 = vmatpush1.msra.mxu0 0.0
    %1479 = vmatprep.subr.mxu0 0.0
    %1480 = vmatpush1.msra.mxu0 0.0
    %1481 = vmatprep.mubr.f32.mxu0 0.0
    %1482 = vmatmul.mubr.f32.gmra.mrb[0].mxu0 %v1415
    %v1483 = vpop.f32.mrb[0].mxu0
    %v1484 = vadd.f32 0.0, %v1483
    %v1485 = vpop.f32.mrb[0].mxu0
    %1486 = vdwg.mxu0
    %v1487 = vadd.f32 %v1321, %v1484
    %1488 = vrot.lane.b32.xlu0 %v987, 104
    %v1489 = vpop.permute.xlu0 %1488
    %1490 = vrot.lane.b32.xlu0 %v987, 72
    %v1491 = vpop.permute.xlu0 %1490
    %v1492 = vsel %vm166, %v1489, 0
    %v1494 = vsel %vm166, %v1491, 0
    %1496 = vmatprep.subr.mxu0 0.0
    %1497 = vmatpush1.xpose.msra.mxu0 %v1494
    %1498 = vmatprep.subr.mxu0 0.0
    %1499 = vmatpush1.xpose.msra.mxu0 0.0
    %1500 = vmatprep.subr.mxu0 0.0
    %1501 = vmatpush1.xpose.msra.mxu0 0.0
    %1502 = vmatprep.subr.mxu0 0.0
    %1503 = vmatpush1.xpose.msra.mxu0 0.0
    %1504 = vmatprep.subr.mxu0 0.0
    %1505 = vmatpush1.xpose.msra.mxu0 0.0
    %1506 = vmatprep.subr.mxu0 0.0
    %1507 = vmatpush1.xpose.msra.mxu0 0.0
    %1508 = vmatprep.subr.mxu0 0.0
    %1509 = vmatpush1.xpose.msra.mxu0 0.0
    %1510 = vmatprep.subr.mxu0 0.0
    %1511 = vmatpush1.xpose.msra.mxu0 0.0
    %1512 = vmatprep.subr.mxu0 0.0
    %1513 = vmatpush1.xpose.msra.mxu0 0.0
    %1514 = vmatprep.subr.mxu0 0.0
    %1515 = vmatpush1.xpose.msra.mxu0 0.0
    %1516 = vmatprep.subr.mxu0 0.0
    %1517 = vmatpush1.xpose.msra.mxu0 0.0
    %1518 = vmatprep.subr.mxu0 0.0
    %1519 = vmatpush1.xpose.msra.mxu0 0.0
    %1520 = vmatprep.subr.mxu0 0.0
    %1521 = vmatpush1.xpose.msra.mxu0 0.0
    %1522 = vmatprep.subr.mxu0 0.0
    %1523 = vmatpush1.xpose.msra.mxu0 0.0
    %1524 = vmatprep.subr.mxu0 0.0
    %1525 = vmatpush1.xpose.msra.mxu0 0.0
    %1526 = vmatprep.subr.mxu0 0.0
    %1527 = vmatpush1.xpose.msra.mxu0 0.0
    %1528 = vmatprep.subr.mxu0 0.0
    %1529 = vmatpush1.xpose.msra.mxu0 0.0
    %1530 = vmatprep.subr.mxu0 0.0
    %1531 = vmatpush1.xpose.msra.mxu0 0.0
    %1532 = vmatprep.subr.mxu0 0.0
    %1533 = vmatpush1.xpose.msra.mxu0 0.0
    %1534 = vmatprep.subr.mxu0 0.0
    %1535 = vmatpush1.xpose.msra.mxu0 0.0
    %1536 = vmatprep.subr.mxu0 0.0
    %1537 = vmatpush1.xpose.msra.mxu0 0.0
    %1538 = vmatprep.subr.mxu0 0.0
    %1539 = vmatpush1.xpose.msra.mxu0 0.0
    %1540 = vmatprep.subr.mxu0 0.0
    %1541 = vmatpush1.xpose.msra.mxu0 0.0
    %1542 = vmatprep.subr.mxu0 0.0
    %1543 = vmatpush1.xpose.msra.mxu0 0.0
    %1544 = vmatprep.subr.mxu0 0.0
    %1545 = vmatpush1.xpose.msra.mxu0 0.0
    %1546 = vmatprep.subr.mxu0 0.0
    %1547 = vmatpush1.xpose.msra.mxu0 0.0
    %1548 = vmatprep.subr.mxu0 0.0
    %1549 = vmatpush1.xpose.msra.mxu0 0.0
    %1550 = vmatprep.subr.mxu0 0.0
    %1551 = vmatpush1.xpose.msra.mxu0 0.0
    %1552 = vmatprep.subr.mxu0 0.0
    %1553 = vmatpush1.xpose.msra.mxu0 0.0
    %1554 = vmatprep.subr.mxu0 0.0
    %1555 = vmatpush1.xpose.msra.mxu0 0.0
    %1556 = vmatprep.subr.mxu0 0.0
    %1557 = vmatpush1.xpose.msra.mxu0 0.0
    %1558 = vmatprep.subr.mxu0 0.0
    %1559 = vmatpush1.xpose.msra.mxu0 0.0
    %1560 = vmatprep.mubr.f32.mxu0 0.0
    %1561 = vmatmul.mubr.f32.gmra.mrb[0].mxu0 %v1492
    %v1562 = vpop.f32.mrb[0].mxu0
    %v1563 = vadd.f32 0.0, %v1562
    %v1564 = vpop.f32.mrb[0].mxu0
    %1565 = vdwg.mxu0
    %v1566 = vsel %vm95, %v1563, -1000000.0
    %v1567 = vsel %vm166, %v1566, -inf
    %1568 = vmax.xlane.f32.xlu0 %v1567
    %v1569 = vpop.xlane.xlu0 %1568
    %v1570 = vsub.f32 %v1566, %v1569
    %v1571 = vmul.f32 %v1570, 1.442695
    %v1572 = vpow.pop %v1571
    %v1573 = vsel %vm166, %v1572, 0.0
    %1574 = vadd.xlane.f32.xlu0 %v1573
    %v1575 = vpop.xlane.xlu0 %1574
    %v1576 = vrcp.pop %v1575
    %v1577 = vmul.f32 %v1572, %v1576
    %1579 = vrot.lane.b32.xlu0 %v989, 96
    %v1580 = vpop.permute.xlu0 %1579
    %v1583 = vsel %vm166, %v1577, 0
    %1585 = vmatprep.subr.mxu0 0.0
    %1586 = vmatpush1.msra.mxu0 %v1580
    %1587 = vmatprep.subr.mxu0 0.0
    %1588 = vmatpush1.msra.mxu0 0.0
    %1589 = vmatprep.subr.mxu0 0.0
    %1590 = vmatpush1.msra.mxu0 0.0
    %1591 = vmatprep.subr.mxu0 0.0
    %1592 = vmatpush1.msra.mxu0 0.0
    %1593 = vmatprep.subr.mxu0 0.0
    %1594 = vmatpush1.msra.mxu0 0.0
    %1595 = vmatprep.subr.mxu0 0.0
    %1596 = vmatpush1.msra.mxu0 0.0
    %1597 = vmatprep.subr.mxu0 0.0
    %1598 = vmatpush1.msra.mxu0 0.0
    %1599 = vmatprep.subr.mxu0 0.0
    %1600 = vmatpush1.msra.mxu0 0.0
    %1601 = vmatprep.subr.mxu0 0.0
    %1602 = vmatpush1.msra.mxu0 0.0
    %1603 = vmatprep.subr.mxu0 0.0
    %1604 = vmatpush1.msra.mxu0 0.0
    %1605 = vmatprep.subr.mxu0 0.0
    %1606 = vmatpush1.msra.mxu0 0.0
    %1607 = vmatprep.subr.mxu0 0.0
    %1608 = vmatpush1.msra.mxu0 0.0
    %1609 = vmatprep.subr.mxu0 0.0
    %1610 = vmatpush1.msra.mxu0 0.0
    %1611 = vmatprep.subr.mxu0 0.0
    %1612 = vmatpush1.msra.mxu0 0.0
    %1613 = vmatprep.subr.mxu0 0.0
    %1614 = vmatpush1.msra.mxu0 0.0
    %1615 = vmatprep.subr.mxu0 0.0
    %1616 = vmatpush1.msra.mxu0 0.0
    %1617 = vmatprep.subr.mxu0 0.0
    %1618 = vmatpush1.msra.mxu0 0.0
    %1619 = vmatprep.subr.mxu0 0.0
    %1620 = vmatpush1.msra.mxu0 0.0
    %1621 = vmatprep.subr.mxu0 0.0
    %1622 = vmatpush1.msra.mxu0 0.0
    %1623 = vmatprep.subr.mxu0 0.0
    %1624 = vmatpush1.msra.mxu0 0.0
    %1625 = vmatprep.subr.mxu0 0.0
    %1626 = vmatpush1.msra.mxu0 0.0
    %1627 = vmatprep.subr.mxu0 0.0
    %1628 = vmatpush1.msra.mxu0 0.0
    %1629 = vmatprep.subr.mxu0 0.0
    %1630 = vmatpush1.msra.mxu0 0.0
    %1631 = vmatprep.subr.mxu0 0.0
    %1632 = vmatpush1.msra.mxu0 0.0
    %1633 = vmatprep.subr.mxu0 0.0
    %1634 = vmatpush1.msra.mxu0 0.0
    %1635 = vmatprep.subr.mxu0 0.0
    %1636 = vmatpush1.msra.mxu0 0.0
    %1637 = vmatprep.subr.mxu0 0.0
    %1638 = vmatpush1.msra.mxu0 0.0
    %1639 = vmatprep.subr.mxu0 0.0
    %1640 = vmatpush1.msra.mxu0 0.0
    %1641 = vmatprep.subr.mxu0 0.0
    %1642 = vmatpush1.msra.mxu0 0.0
    %1643 = vmatprep.subr.mxu0 0.0
    %1644 = vmatpush1.msra.mxu0 0.0
    %1645 = vmatprep.subr.mxu0 0.0
    %1646 = vmatpush1.msra.mxu0 0.0
    %1647 = vmatprep.subr.mxu0 0.0
    %1648 = vmatpush1.msra.mxu0 0.0
    %1649 = vmatprep.mubr.f32.mxu0 0.0
    %1650 = vmatmul.mubr.f32.gmra.mrb[0].mxu0 %v1583
    %v1651 = vpop.f32.mrb[0].mxu0
    %v1652 = vadd.f32 0.0, %v1651
    %v1653 = vpop.f32.mrb[0].mxu0
    %1654 = vdwg.mxu0
    %v1655 = vadd.f32 %v1487, %v1652
    %v1656 = vadd.f32 %v1655, %v947
    %v1657 = vsel %vm118, %v1656, 0.0
    %1658 = vadd.xlane.f32.xlu0 %v1657
    %v1659 = vpop.xlane.xlu0 %1658
    %v1660 = vmul.f32 %v1656, %v1656
    %v1661 = vsel %vm118, %v1660, 0.0
    %1662 = vadd.xlane.f32.xlu0 %v1661
    %v1663 = vpop.xlane.xlu0 %1662
    %v1664 = vrot.slane %v1659, 4
    %v1665 = vadd.f32 %v1659, %v1664
    %v1666 = vrot.slane %v1665, 2
    %v1667 = vadd.f32 %v1665, %v1666
    %v1668 = vrot.slane %v1667, 1
    %v1669 = vadd.f32 %v1667, %v1668
    %v1670 = vmul.f32 %v1669, 0.00390625
    %v1671 = vrot.slane %v1663, 4
    %v1672 = vadd.f32 %v1663, %v1671
    %v1673 = vrot.slane %v1672, 2
    %v1674 = vadd.f32 %v1672, %v1673
    %v1675 = vrot.slane %v1674, 1
    %v1676 = vadd.f32 %v1674, %v1675
    %v1677 = vmul.f32 %v1676, 0.00390625
    %v1678 = vmul.f32 %v1670, %v1670
    %v1679 = vsub.f32 %v1677, %v1678
    %v1680 = vmax.f32 %v1679, 0.0
    %v1681 = vsub.f32 %v1656, %v1670
    %v1682 = vadd.f32 %v1680, 1e-05
    %v1683 = vrsqrt.pop %v1682
    %v1684 = vmul.f32 %v1681, %v1683
    %v1685 = vmul.f32 %v1684, %v82
    %v1686 = vadd.f32 %v1685, %v84
    %v1687 = vpack.c.bf16 %v1686, %v1686
    %v1689 = vsel %vm118, %v1687, 0
    %1691 = vmatprep.subr.bf16.mxu0 0
    %1692 = vmatpush1.bf16.msra.mxu0 %v867
    %1693 = vmatprep.subr.bf16.mxu0 0
    %1694 = vmatpush1.bf16.msra.mxu0 %v868
    %1695 = vmatprep.subr.bf16.mxu0 0
    %1696 = vmatpush1.bf16.msra.mxu0 0
    %1697 = vmatprep.subr.bf16.mxu0 0
    %1698 = vmatpush1.bf16.msra.mxu0 0
    %1699 = vmatprep.subr.bf16.mxu0 0
    %1700 = vmatpush1.bf16.msra.mxu0 0
    %1701 = vmatprep.subr.bf16.mxu0 0
    %1702 = vmatpush1.bf16.msra.mxu0 0
    %1703 = vmatprep.subr.bf16.mxu0 0
    %1704 = vmatpush1.bf16.msra.mxu0 0
    %1705 = vmatprep.subr.bf16.mxu0 0
    %1706 = vmatpush1.bf16.msra.mxu0 0
    %1707 = vmatprep.subr.bf16.mxu0 0
    %1708 = vmatpush1.bf16.msra.mxu0 0
    %1709 = vmatprep.subr.bf16.mxu0 0
    %1710 = vmatpush1.bf16.msra.mxu0 0
    %1711 = vmatprep.subr.bf16.mxu0 0
    %1712 = vmatpush1.bf16.msra.mxu0 0
    %1713 = vmatprep.subr.bf16.mxu0 0
    %1714 = vmatpush1.bf16.msra.mxu0 0
    %1715 = vmatprep.subr.bf16.mxu0 0
    %1716 = vmatpush1.bf16.msra.mxu0 0
    %1717 = vmatprep.subr.bf16.mxu0 0
    %1718 = vmatpush1.bf16.msra.mxu0 0
    %1719 = vmatprep.subr.bf16.mxu0 0
    %1720 = vmatpush1.bf16.msra.mxu0 0
    %1721 = vmatprep.subr.bf16.mxu0 0
    %1722 = vmatpush1.bf16.msra.mxu0 0
    %1723 = vmatprep.mubr.bf16.mxu0 0
    %1724 = vmatmul.mubr.bf16.gmra.mrb[0].mxu0 %v1689
    %v1725 = vpop.f32.mrb[0].mxu0
    %v1726 = vadd.f32 %v90, %v1725
    %v1727 = vpop.f32.mrb[0].mxu0
    %v1728 = vpop.f32.mrb[0].mxu0
    %v1729 = vpop.f32.mrb[0].mxu0
    %1730 = vdwg.mxu0
    %v1731 = vadd.f32 %v1726, %v1686
    %v1732 = vsel %vm118, %v1731, 0.0
    %1733 = vadd.xlane.f32.xlu0 %v1732
    %v1734 = vpop.xlane.xlu0 %1733
    %v1735 = vmul.f32 %v1731, %v1731
    %v1736 = vsel %vm118, %v1735, 0.0
    %1737 = vadd.xlane.f32.xlu0 %v1736
    %v1738 = vpop.xlane.xlu0 %1737
    %v1739 = vrot.slane %v1734, 4
    %v1740 = vadd.f32 %v1734, %v1739
    %v1741 = vrot.slane %v1740, 2
    %v1742 = vadd.f32 %v1740, %v1741
    %v1743 = vrot.slane %v1742, 1
    %v1744 = vadd.f32 %v1742, %v1743
    %v1745 = vmul.f32 %v1744, 0.00390625
    %v1746 = vrot.slane %v1738, 4
    %v1747 = vadd.f32 %v1738, %v1746
    %v1748 = vrot.slane %v1747, 2
    %v1749 = vadd.f32 %v1747, %v1748
    %v1750 = vrot.slane %v1749, 1
    %v1751 = vadd.f32 %v1749, %v1750
    %v1752 = vmul.f32 %v1751, 0.00390625
    %v1753 = vmul.f32 %v1745, %v1745
    %v1754 = vsub.f32 %v1752, %v1753
    %v1755 = vmax.f32 %v1754, 0.0
    %v1756 = vsub.f32 %v1731, %v1745
    %v1757 = vadd.f32 %v1755, 1e-05
    %v1758 = vrsqrt.pop %v1757
    %v1759 = vmul.f32 %v1756, %v1758
    %v1760 = vmul.f32 %v1759, %v86
    %v1761 = vadd.f32 %v1760, %v88
    %s1762 = scalar_lea.vmem [#allocation10], 8
    %1763 = vst.msk [vmem:[%s1762] sm:$0xff] %vm118, %v1761
    // Predicated region
    $region34: #{tpu_custom_call.1} parent=1 // pred_check
      _
    $region35: #{tpu_custom_call.1} parent=1 // pred_check_branch
      %1765 = sbr.rel (0) target = $region37
    $region36: #{tpu_custom_call.1} parent=1 // pred_region
      %s1767 = ssub.s32 256, 256
      %1768 = vsyncadd [#allocation4], %s1767
      %s1769 = sshll.u32 [#allocation10], 4
      %s1770 = int_to_ptr.vmem [resolvable:$true] %s1769
      %1775 = dma.vmem_to_hbm [thread:$0]  %s1770, 256, %s4, [#allocation4], 128, 128, 8
    $region37: #{tpu_custom_call.1} parent=1 // pred_fallthru
      _
    // Predicated region
    $region38: #{tpu_custom_call.1} parent=1 // pred_check
      _
    $region39: #{tpu_custom_call.1} parent=1 // pred_check_branch
      %1777 = sbr.rel (0) target = $region41
    $region40: #{tpu_custom_call.1} parent=1 // pred_region
      %1778 = dma.done [#allocation4], 256
    $region41: #{tpu_custom_call.1} parent=1 // pred_fallthru
      _
    %1779 = vsyncpa [#allocation3], 1
    %1780 = vsyncpa [#allocation6], 1
    %1781 = vsyncpa [#allocation9], 1
    %1782 = vsyncpa [#allocation4], 1

</llo_original>
